<compile_context>
chip_gen: v7x
topology: tpu7x:2x2x1
jax: 0.10.0
libtpu: 0.0.40
codegen_flags: <defaults>
</compile_context>

<pallas_src>
import numpy as np
import jax
import jax.numpy as jnp
from jax.experimental import pallas as pl
from jax.experimental.pallas import tpu as pltpu


# ----------------------------------------------------------------------------
# One-time probe of pltpu.roll: confirms it lowers on this backend and pins
# down its rotation convention (jnp.roll-style or the opposite), so the
# in-kernel lane shifts are direction-safe across jax versions.  If the
# primitive is unavailable we fall back to a circular slice+concat shift.
# ----------------------------------------------------------------------------
def _probe_roll():
    def k(x_ref, o_ref):
        o_ref[...] = pltpu.roll(x_ref[...], 1, axis=1)

    x = jnp.broadcast_to(jnp.arange(128, dtype=jnp.float32), (8, 128))
    out = pl.pallas_call(
        k, out_shape=jax.ShapeDtypeStruct((8, 128), jnp.float32))(x)
    first = float(jax.block_until_ready(out)[0, 0])
    # jnp.roll convention (out[i] = in[(i - shift) % n]) puts 127 into lane 0.
    return True, (-1 if first > 64.0 else 1)


try:
    _HAVE_ROLL, _ROLL_SIGN = _probe_roll()
except Exception:        # pragma: no cover — keep a known-good fallback path
    _HAVE_ROLL, _ROLL_SIGN = False, -1


def _shift_lanes(v, s, n):
    """Circular lane shift: u[:, L] = v[:, (L + s) % n].  Callers mask the wraps."""
    if s % n == 0:
        return v
    if _HAVE_ROLL:
        return pltpu.roll(v, (_ROLL_SIGN * s) % n, axis=1)   # XLU slot, not VALU/vst
    k = s % n
    return jnp.concatenate([v[:, k:], v[:, :k]], axis=1)


def _maxpool_select(h, w, tb):
    """Block-diag 0/1 matrix: after the shift-max, the 2x2/stride-2 window max of each image
    sits at even (y, x); this compacts h*w -> (h//2)*(w//2) lanes per image via one matmul."""
    hp, wp = h // 2, w // 2
    s = np.zeros((h * w, hp * wp), np.float32)
    for yo in range(hp):
        for xo in range(wp):
            s[(2 * yo) * w + 2 * xo, yo * wp + xo] = 1.0
    return jnp.asarray(np.kron(np.eye(tb, dtype=np.float32), s), dtype=jnp.bfloat16)


def _avgpool_matrix(h, w, oh, ow, tb):
    """Block-diag pooling matrix: AdaptiveAvgPool2d((7,7)) on an 8x8 map == 2x2/stride-1 mean
    over the top-left 7x7 windows; all entries are 0.25 (exact in bf16)."""
    p = np.zeros((h * w, oh * ow), np.float32)
    for yo in range(oh):
        for xo in range(ow):
            for dy in range(2):
                for dx in range(2):
                    p[(yo + dy) * w + (xo + dx), yo * ow + xo] = 0.25
    return jnp.asarray(np.kron(np.eye(tb, dtype=np.float32), p), dtype=jnp.bfloat16)


def feature_extractor_forward(x_nchw, params):
    """x_nchw: (B, 4, 16, 16) f32 -> (B, 16, 7, 7) f32 (NCHW, identical to PyTorch)."""
    B, c_in, H, W = x_nchw.shape
    w1, b1 = params["w1"], params["b1"]          # OIHW (8, 4, 3, 3), (8,)
    w2, b2 = params["w2"], params["b2"]          # OIHW (16, 8, 3, 3), (16,)
    c1, c2 = w1.shape[0], w2.shape[0]
    Hp, Wp = H // 2, W // 2                      # after MaxPool2d(2)
    OH = OW = 7                                  # AdaptiveAvgPool2d((7, 7))
    assert (W & (W - 1)) == 0 and (Wp & (Wp - 1)) == 0, "flattened shifts assume pow2 width"
    assert Hp == OH + 1 and Wp == OW + 1         # 8x8 -> 7x7: every window is 2x2 / stride 1
    assert c1 % 8 == 0

    # ---- batch tiling: TB images per grid step (amortize grid-step overhead) --------------
    # TB is forced even so every rolled lane axis (TB*256 and TB*64) is a multiple of 128 and
    # the pooled-stage tiles are lane-dense (v5e vst/vreg utilization); the grid stays >= 2 so
    # both v7x TensorCores are busy.  Padding images are zeros and cost ~nothing.
    TB_CAP = 8
    n_steps = 1 if B == 1 else max(2, -(-B // TB_CAP))
    TB = -(-B // n_steps)
    TB += TB & 1
    B_pad = TB * n_steps
    c_in_p = ((c_in + 7) // 8) * 8               # keep im2col sublane concat tile-aligned
    N1, N2, NO = TB * H * W, TB * Hp * Wp, TB * OH * OW

    # ---- host-side layout plumbing (tiny ops on (B,4,256); lane-dense slabs for the kernel) --
    xb = x_nchw.reshape(B, c_in, H * W)
    if B_pad != B:
        xb = jnp.concatenate([xb, jnp.zeros((B_pad - B, c_in, H * W), xb.dtype)], axis=0)
    if c_in_p != c_in:
        xb = jnp.concatenate([xb, jnp.zeros((B_pad, c_in_p - c_in, H * W), xb.dtype)], axis=1)
    # images concatenated along lanes: lane = b*H*W + y*W + x
    x_lanes = jnp.transpose(xb, (1, 0, 2)).reshape(c_in_p, B_pad * H * W)

    # ---- one-time weight / constant-matrix prep (bf16 MXU operands, f32 bias/VPU work) -----
    w1p = w1
    if c_in_p != c_in:
        w1p = jnp.concatenate([w1, jnp.zeros((c1, c_in_p - c_in, 3, 3), w1.dtype)], axis=1)
    # im2col weights: column = (ky*3 + kx)*Cin + ci  (cross-correlation, pad=1)
    w1m = jnp.transpose(w1p, (0, 2, 3, 1)).reshape(c1, 9 * c_in_p).astype(jnp.bfloat16)
    w2m = jnp.transpose(w2, (0, 2, 3, 1)).reshape(c2, 9 * c1).astype(jnp.bfloat16)
    b1c = b1.reshape(c1, 1).astype(jnp.float32)
    b2c = b2.reshape(c2, 1).astype(jnp.float32)
    selp = _maxpool_select(H, W, TB)             # (TB*256, TB*64)  bf16 0/1
    selc = _avgpool_matrix(Hp, Wp, OH, OW, TB)   # (TB*64,  TB*49)  bf16 0/0.25

    taps = [(dy, dx) for dy in (-1, 0, 1) for dx in (-1, 0, 1)]

    def kernel(x_ref, w1_ref, b1_ref, w2_ref, b2_ref, selp_ref, selc_ref, o_ref):
        # Hoisted boundary masks: one iota + a few compares per stage per step, reused by every
        # shifted tap (JAX does not CSE iota/compare chains).
        def make_masks(h, w, n):
            lw = (w - 1).bit_length()
            lane = jax.lax.broadcasted_iota(jnp.int32, (1, n), 1)
            xx = lane & (w - 1)                    # image-local x
            yy = (lane >> lw) & (h - 1)            # image-local y
            okx = {-1: xx >= 1, 0: None, 1: xx <= w - 2}
            oky = {-1: yy >= 1, 0: None, 1: yy <= h - 2}
            out = {}
            for dy in (-1, 0, 1):
                for dx in (-1, 0, 1):
                    a, b = oky[dy], okx[dx]
                    out[(dy, dx)] = a if b is None else (b if a is None else
                                                         jnp.logical_and(a, b))
            return out

        mask1 = make_masks(H, W, N1)
        mask2 = make_masks(Hp, Wp, N2)

        def shift(v, dy, dx, w, n, masks):
            """u[:, b*h*w + y*w + x] = v[:, b*h*w + (y+dy)*w + (x+dx)], 0 when the source pixel
            falls outside its own image (conv/pool zero padding, image boundaries)."""
            u = _shift_lanes(v, dy * w + dx, n)
            m = masks[(dy, dx)]
            return u if m is None else jnp.where(m, u, 0.0)

        # Conv2d(4->8, 3x3, pad=1) + bias + ReLU as ONE im2col matmul on the MXU:
        #   (8, 9*Cin) x (9*Cin, TB*256), bf16 operands, f32 accumulate.
        x = x_ref[...]                                                       # (Cin, N1) f32
        cols1 = jnp.concatenate([shift(x, dy, dx, W, N1, mask1) for dy, dx in taps], axis=0)
        h1 = jnp.dot(w1_ref[...], cols1.astype(jnp.bfloat16),
                     preferred_element_type=jnp.float32)
        h1 = jnp.maximum(h1 + b1_ref[...], 0.0)                              # (C1, N1) f32

        # MaxPool2d(2): pairwise max along x then y (window max lands at even (y, x)), then
        # compact 256 -> 64 lanes per image with a 0/1 selection matmul (MXU is idle anyway).
        m = jnp.maximum(h1, shift(h1, 0, 1, W, N1, mask1))
        m = jnp.maximum(m, shift(m, 1, 0, W, N1, mask1))
        p1 = jnp.dot(m.astype(jnp.bfloat16), selp_ref[...],
                     preferred_element_type=jnp.float32)                     # (C1, N2) f32

        # Conv2d(8->16, 3x3, pad=1) + bias + ReLU as ONE im2col matmul: (16, 72) x (72, TB*64).
        cols2 = jnp.concatenate([shift(p1, dy, dx, Wp, N2, mask2) for dy, dx in taps], axis=0)
        h2 = jnp.dot(w2_ref[...], cols2.astype(jnp.bfloat16),
                     preferred_element_type=jnp.float32)
        h2 = jnp.maximum(h2 + b2_ref[...], 0.0)                              # (C2, N2) f32

        # AdaptiveAvgPool2d((7, 7)): one 0.25-weighted pooling matmul -> single store per step.
        o_ref[0] = jnp.dot(h2.astype(jnp.bfloat16), selc_ref[...],
                           preferred_element_type=jnp.float32).astype(o_ref.dtype)

    out = pl.pallas_call(
        kernel,
        out_shape=jax.ShapeDtypeStruct((n_steps, c2, NO), jnp.float32),
        grid=(n_steps,),
        in_specs=[
            pl.BlockSpec((c_in_p, N1), lambda s: (0, s)),
            pl.BlockSpec((c1, 9 * c_in_p), lambda s: (0, 0)),
            pl.BlockSpec((c1, 1), lambda s: (0, 0)),
            pl.BlockSpec((c2, 9 * c1), lambda s: (0, 0)),
            pl.BlockSpec((c2, 1), lambda s: (0, 0)),
            pl.BlockSpec((TB * H * W, TB * Hp * Wp), lambda s: (0, 0)),
            pl.BlockSpec((TB * Hp * Wp, NO), lambda s: (0, 0)),
        ],
        out_specs=pl.BlockSpec((1, c2, NO), lambda s: (s, 0, 0)),
        compiler_params=pltpu.CompilerParams(dimension_semantics=("parallel",)),
    )(x_lanes, w1m, b1c, w2m, b2c, selp, selc)

    # (n_steps, C2, TB*49) -> (B, C2, 7, 7): tiny wrapper-side layout plumbing.
    out = out.reshape(n_steps, c2, TB, OH * OW)
    out = jnp.transpose(out, (0, 2, 1, 3)).reshape(B_pad, c2, OH, OW)
    return out[:B]


# ---------------------------------------------------------------------------
# Pure-JAX reference (correctness check only)
# ---------------------------------------------------------------------------
def _reference(x_nchw, params):
    dn = ("NCHW", "OIHW", "NCHW")
    y = jax.lax.conv_general_dilated(x_nchw, params["w1"], (1, 1), ((1, 1), (1, 1)),
                                     dimension_numbers=dn,
                                     precision=jax.lax.Precision.HIGHEST)
    y = y + params["b1"][None, :, None, None]
    y = jnp.maximum(y, 0.0)
    y = jax.lax.reduce_window(y, -jnp.inf, jax.lax.max,
                              (1, 1, 2, 2), (1, 1, 2, 2), "VALID")
    y = jax.lax.conv_general_dilated(y, params["w2"], (1, 1), ((1, 1), (1, 1)),
                                     dimension_numbers=dn,
                                     precision=jax.lax.Precision.HIGHEST)
    y = y + params["b2"][None, :, None, None]
    y = jnp.maximum(y, 0.0)
    # AdaptiveAvgPool2d((7, 7)) on an 8x8 map == mean over 2x2 windows, stride 1.
    y = jax.lax.reduce_window(y, 0.0, jax.lax.add,
                              (1, 1, 2, 2), (1, 1, 1, 1), "VALID") / 4.0
    return y


if __name__ == "__main__":
    key = jax.random.PRNGKey(0)
    kx, k1, k2, k3, k4 = jax.random.split(key, 5)
    x = jax.random.normal(kx, (2, 4, 16, 16), jnp.float32)            # NCHW input
    params = {
        # weights stored OIHW exactly like PyTorch Conv2d
        "w1": jax.random.normal(k1, (8, 4, 3, 3), jnp.float32) * 0.1,
        "b1": jax.random.normal(k2, (8,), jnp.float32) * 0.1,
        "w2": jax.random.normal(k3, (16, 8, 3, 3), jnp.float32) * 0.1,
        "b2": jax.random.normal(k4, (16,), jnp.float32) * 0.1,
    }

    out = jax.jit(feature_extractor_forward)(x, params)
    out = jax.block_until_ready(out)

    ref = _reference(x, params)
    assert out.shape == (2, 16, 7, 7), out.shape
    max_err = float(jnp.max(jnp.abs(out - ref)))
    assert jnp.allclose(out, ref, atol=2e-2, rtol=2e-2), max_err
    print("KERNEL_OK")
</pallas_src>

<mosaic_0001>
module attributes {stable_mosaic.version = 11 : i64} {
  func.func @k(%arg0: memref<8x128xf32, #tpu.memory_space<vmem>>, %arg1: memref<8x128xf32, #tpu.memory_space<vmem>>) attributes {dimension_semantics = [], scalar_prefetch = 0 : i64, scratch_operands = 0 : i64, tpu.core_type = #tpu.core_type<tc>} {
    %c0 = arith.constant 0 : index
    %c0_0 = arith.constant 0 : index
    %0 = vector.load %arg0[%c0, %c0_0] : memref<8x128xf32, #tpu.memory_space<vmem>>, vector<8x128xf32>
    %c1_i32 = arith.constant 1 : i32
    %1 = tpu.dynamic_rotate %0 by %c1_i32 dim 1 : vector<8x128xf32>, i32 -> vector<8x128xf32>
    %c0_1 = arith.constant 0 : index
    %c0_2 = arith.constant 0 : index
    %2 = vector.load %arg1[%c0_1, %c0_2] : memref<8x128xf32, #tpu.memory_space<vmem>>, vector<8x128xf32>
    tpu.vector_store %arg1[%c0_1, %c0_2], %1 {strides = array<i32>} : memref<8x128xf32, #tpu.memory_space<vmem>>, vector<8x128xf32>,
    return
  }
}

module attributes {stable_mosaic.version = 11 : i64} {
  func.func @kernel(%arg0: i32, %arg1: memref<8x512xf32, #tpu.memory_space<vmem>>, %arg2: memref<8x72xbf16, #tpu.memory_space<vmem>>, %arg3: memref<8x1xf32, #tpu.memory_space<vmem>>, %arg4: memref<16x72xbf16, #tpu.memory_space<vmem>>, %arg5: memref<16x1xf32, #tpu.memory_space<vmem>>, %arg6: memref<512x128xbf16, #tpu.memory_space<vmem>>, %arg7: memref<128x98xbf16, #tpu.memory_space<vmem>>, %arg8: memref<1x16x98xf32, #tpu.memory_space<vmem>>) attributes {dimension_semantics = [#tpu.dimension_semantics<parallel>], iteration_bounds = array<i64: 2>, scalar_prefetch = 0 : i64, scratch_operands = 0 : i64, tpu.core_type = #tpu.core_type<tc>, window_params = [{transform_indices = @transform_0, window_bounds = array<i64: 8, 512>}, {pipeline_mode = #tpu.pipeline_mode<synchronous>, transform_indices = @transform_1, window_bounds = array<i64: 8, 72>}, {pipeline_mode = #tpu.pipeline_mode<synchronous>, transform_indices = @transform_2, window_bounds = array<i64: 8, 1>}, {pipeline_mode = #tpu.pipeline_mode<synchronous>, transform_indices = @transform_3, window_bounds = array<i64: 16, 72>}, {pipeline_mode = #tpu.pipeline_mode<synchronous>, transform_indices = @transform_4, window_bounds = array<i64: 16, 1>}, {pipeline_mode = #tpu.pipeline_mode<synchronous>, transform_indices = @transform_5, window_bounds = array<i64: 512, 128>}, {pipeline_mode = #tpu.pipeline_mode<synchronous>, transform_indices = @transform_6, window_bounds = array<i64: 128, 98>}, {transform_indices = @transform_7, window_bounds = array<i64: 1, 16, 98>}]} {
    %0 = tpu.iota {dimensions = array<i32: 1>} : vector<1x512xi32>
    %c15_i32 = arith.constant 15 : i32
    %1 = vector.broadcast %c15_i32 : i32 to vector<1x512xi32>
    %2 = arith.andi %0, %1 : vector<1x512xi32>
    %c4_i32 = arith.constant 4 : i32
    %3 = vector.broadcast %c4_i32 : i32 to vector<1x512xi32>
    %4 = arith.shrsi %0, %3 : vector<1x512xi32>
    %c15_i32_0 = arith.constant 15 : i32
    %5 = vector.broadcast %c15_i32_0 : i32 to vector<1x512xi32>
    %6 = arith.andi %4, %5 : vector<1x512xi32>
    %c1_i32 = arith.constant 1 : i32
    %7 = vector.broadcast %c1_i32 : i32 to vector<1x512xi32>
    %8 = arith.cmpi sge, %2, %7 : vector<1x512xi32>
    %c14_i32 = arith.constant 14 : i32
    %9 = vector.broadcast %c14_i32 : i32 to vector<1x512xi32>
    %10 = arith.cmpi sle, %2, %9 : vector<1x512xi32>
    %c1_i32_1 = arith.constant 1 : i32
    %11 = vector.broadcast %c1_i32_1 : i32 to vector<1x512xi32>
    %12 = arith.cmpi sge, %6, %11 : vector<1x512xi32>
    %c14_i32_2 = arith.constant 14 : i32
    %13 = vector.broadcast %c14_i32_2 : i32 to vector<1x512xi32>
    %14 = arith.cmpi sle, %6, %13 : vector<1x512xi32>
    %15 = arith.andi %12, %8 : vector<1x512xi1>
    %16 = arith.andi %12, %10 : vector<1x512xi1>
    %17 = arith.andi %14, %8 : vector<1x512xi1>
    %18 = arith.andi %14, %10 : vector<1x512xi1>
    %19 = tpu.iota {dimensions = array<i32: 1>} : vector<1x128xi32>
    %c7_i32 = arith.constant 7 : i32
    %20 = vector.broadcast %c7_i32 : i32 to vector<1x128xi32>
    %21 = arith.andi %19, %20 : vector<1x128xi32>
    %c3_i32 = arith.constant 3 : i32
    %22 = vector.broadcast %c3_i32 : i32 to vector<1x128xi32>
    %23 = arith.shrsi %19, %22 : vector<1x128xi32>
    %c7_i32_3 = arith.constant 7 : i32
    %24 = vector.broadcast %c7_i32_3 : i32 to vector<1x128xi32>
    %25 = arith.andi %23, %24 : vector<1x128xi32>
    %c1_i32_4 = arith.constant 1 : i32
    %26 = vector.broadcast %c1_i32_4 : i32 to vector<1x128xi32>
    %27 = arith.cmpi sge, %21, %26 : vector<1x128xi32>
    %c6_i32 = arith.constant 6 : i32
    %28 = vector.broadcast %c6_i32 : i32 to vector<1x128xi32>
    %29 = arith.cmpi sle, %21, %28 : vector<1x128xi32>
    %c1_i32_5 = arith.constant 1 : i32
    %30 = vector.broadcast %c1_i32_5 : i32 to vector<1x128xi32>
    %31 = arith.cmpi sge, %25, %30 : vector<1x128xi32>
    %c6_i32_6 = arith.constant 6 : i32
    %32 = vector.broadcast %c6_i32_6 : i32 to vector<1x128xi32>
    %33 = arith.cmpi sle, %25, %32 : vector<1x128xi32>
    %34 = arith.andi %31, %27 : vector<1x128xi1>
    %35 = arith.andi %31, %29 : vector<1x128xi1>
    %36 = arith.andi %33, %27 : vector<1x128xi1>
    %37 = arith.andi %33, %29 : vector<1x128xi1>
    %c0 = arith.constant 0 : index
    %c0_7 = arith.constant 0 : index
    %38 = vector.load %arg1[%c0, %c0_7] : memref<8x512xf32, #tpu.memory_space<vmem>>, vector<8x512xf32>
    %39 = vector.extract_strided_slice %38 {offsets = [0, 495], sizes = [8, 17], strides = [1, 1]} : vector<8x512xf32> to vector<8x17xf32>
    %40 = vector.extract_strided_slice %38 {offsets = [0, 0], sizes = [8, 495], strides = [1, 1]} : vector<8x512xf32> to vector<8x495xf32>
    %41 = tpu.concatenate %39, %40 in 1 : vector<8x17xf32>, vector<8x495xf32> -> vector<8x512xf32>
    %cst = arith.constant 0.000000e+00 : f32
    %42 = vector.shape_cast %15 : vector<1x512xi1> to vector<1x512xi1>
    %43 = vector.broadcast %42 : vector<1x512xi1> to vector<8x512xi1>
    %44 = vector.broadcast %cst : f32 to vector<8x512xf32>
    %45 = arith.select %43, %41, %44 : vector<8x512xi1>, vector<8x512xf32>
    %46 = vector.extract_strided_slice %38 {offsets = [0, 496], sizes = [8, 16], strides = [1, 1]} : vector<8x512xf32> to vector<8x16xf32>
    %47 = vector.extract_strided_slice %38 {offsets = [0, 0], sizes = [8, 496], strides = [1, 1]} : vector<8x512xf32> to vector<8x496xf32>
    %48 = tpu.concatenate %46, %47 in 1 : vector<8x16xf32>, vector<8x496xf32> -> vector<8x512xf32>
    %cst_8 = arith.constant 0.000000e+00 : f32
    %49 = vector.shape_cast %12 : vector<1x512xi1> to vector<1x512xi1>
    %50 = vector.broadcast %49 : vector<1x512xi1> to vector<8x512xi1>
    %51 = vector.broadcast %cst_8 : f32 to vector<8x512xf32>
    %52 = arith.select %50, %48, %51 : vector<8x512xi1>, vector<8x512xf32>
    %53 = vector.extract_strided_slice %38 {offsets = [0, 497], sizes = [8, 15], strides = [1, 1]} : vector<8x512xf32> to vector<8x15xf32>
    %54 = vector.extract_strided_slice %38 {offsets = [0, 0], sizes = [8, 497], strides = [1, 1]} : vector<8x512xf32> to vector<8x497xf32>
    %55 = tpu.concatenate %53, %54 in 1 : vector<8x15xf32>, vector<8x497xf32> -> vector<8x512xf32>
    %cst_9 = arith.constant 0.000000e+00 : f32
    %56 = vector.shape_cast %16 : vector<1x512xi1> to vector<1x512xi1>
    %57 = vector.broadcast %56 : vector<1x512xi1> to vector<8x512xi1>
    %58 = vector.broadcast %cst_9 : f32 to vector<8x512xf32>
    %59 = arith.select %57, %55, %58 : vector<8x512xi1>, vector<8x512xf32>
    %60 = vector.extract_strided_slice %38 {offsets = [0, 511], sizes = [8, 1], strides = [1, 1]} : vector<8x512xf32> to vector<8x1xf32>
    %61 = vector.extract_strided_slice %38 {offsets = [0, 0], sizes = [8, 511], strides = [1, 1]} : vector<8x512xf32> to vector<8x511xf32>
    %62 = tpu.concatenate %60, %61 in 1 : vector<8x1xf32>, vector<8x511xf32> -> vector<8x512xf32>
    %cst_10 = arith.constant 0.000000e+00 : f32
    %63 = vector.shape_cast %8 : vector<1x512xi1> to vector<1x512xi1>
    %64 = vector.broadcast %63 : vector<1x512xi1> to vector<8x512xi1>
    %65 = vector.broadcast %cst_10 : f32 to vector<8x512xf32>
    %66 = arith.select %64, %62, %65 : vector<8x512xi1>, vector<8x512xf32>
    %67 = vector.extract_strided_slice %38 {offsets = [0, 1], sizes = [8, 511], strides = [1, 1]} : vector<8x512xf32> to vector<8x511xf32>
    %68 = vector.extract_strided_slice %38 {offsets = [0, 0], sizes = [8, 1], strides = [1, 1]} : vector<8x512xf32> to vector<8x1xf32>
    %69 = tpu.concatenate %67, %68 in 1 : vector<8x511xf32>, vector<8x1xf32> -> vector<8x512xf32>
    %cst_11 = arith.constant 0.000000e+00 : f32
    %70 = vector.shape_cast %10 : vector<1x512xi1> to vector<1x512xi1>
    %71 = vector.broadcast %70 : vector<1x512xi1> to vector<8x512xi1>
    %72 = vector.broadcast %cst_11 : f32 to vector<8x512xf32>
    %73 = arith.select %71, %69, %72 : vector<8x512xi1>, vector<8x512xf32>
    %74 = vector.extract_strided_slice %38 {offsets = [0, 15], sizes = [8, 497], strides = [1, 1]} : vector<8x512xf32> to vector<8x497xf32>
    %75 = vector.extract_strided_slice %38 {offsets = [0, 0], sizes = [8, 15], strides = [1, 1]} : vector<8x512xf32> to vector<8x15xf32>
    %76 = tpu.concatenate %74, %75 in 1 : vector<8x497xf32>, vector<8x15xf32> -> vector<8x512xf32>
    %cst_12 = arith.constant 0.000000e+00 : f32
    %77 = vector.shape_cast %17 : vector<1x512xi1> to vector<1x512xi1>
    %78 = vector.broadcast %77 : vector<1x512xi1> to vector<8x512xi1>
    %79 = vector.broadcast %cst_12 : f32 to vector<8x512xf32>
    %80 = arith.select %78, %76, %79 : vector<8x512xi1>, vector<8x512xf32>
    %81 = vector.extract_strided_slice %38 {offsets = [0, 16], sizes = [8, 496], strides = [1, 1]} : vector<8x512xf32> to vector<8x496xf32>
    %82 = vector.extract_strided_slice %38 {offsets = [0, 0], sizes = [8, 16], strides = [1, 1]} : vector<8x512xf32> to vector<8x16xf32>
    %83 = tpu.concatenate %81, %82 in 1 : vector<8x496xf32>, vector<8x16xf32> -> vector<8x512xf32>
    %cst_13 = arith.constant 0.000000e+00 : f32
    %84 = vector.shape_cast %14 : vector<1x512xi1> to vector<1x512xi1>
    %85 = vector.broadcast %84 : vector<1x512xi1> to vector<8x512xi1>
    %86 = vector.broadcast %cst_13 : f32 to vector<8x512xf32>
    %87 = arith.select %85, %83, %86 : vector<8x512xi1>, vector<8x512xf32>
    %88 = vector.extract_strided_slice %38 {offsets = [0, 17], sizes = [8, 495], strides = [1, 1]} : vector<8x512xf32> to vector<8x495xf32>
    %89 = vector.extract_strided_slice %38 {offsets = [0, 0], sizes = [8, 17], strides = [1, 1]} : vector<8x512xf32> to vector<8x17xf32>
    %90 = tpu.concatenate %88, %89 in 1 : vector<8x495xf32>, vector<8x17xf32> -> vector<8x512xf32>
    %cst_14 = arith.constant 0.000000e+00 : f32
    %91 = vector.shape_cast %18 : vector<1x512xi1> to vector<1x512xi1>
    %92 = vector.broadcast %91 : vector<1x512xi1> to vector<8x512xi1>
    %93 = vector.broadcast %cst_14 : f32 to vector<8x512xf32>
    %94 = arith.select %92, %90, %93 : vector<8x512xi1>, vector<8x512xf32>
    %95 = tpu.concatenate %45, %52, %59, %66, %38, %73, %80, %87, %94 in 0 : vector<8x512xf32>, vector<8x512xf32>, vector<8x512xf32>, vector<8x512xf32>, vector<8x512xf32>, vector<8x512xf32>, vector<8x512xf32>, vector<8x512xf32>, vector<8x512xf32> -> vector<72x512xf32>
    %c0_15 = arith.constant 0 : index
    %c0_16 = arith.constant 0 : index
    %96 = vector.load %arg2[%c0_15, %c0_16] : memref<8x72xbf16, #tpu.memory_space<vmem>>, vector<8x72xbf16>
    %97 = arith.truncf %95 : vector<72x512xf32> to vector<72x512xbf16>
    %cst_17 = arith.constant dense<0.000000e+00> : vector<8x512xf32>
    %98 = tpu.matmul %96, %97, %cst_17 {dimension_numbers = #tpu.dot_dimension_numbers<[1], [0], [0], [1], [0, 0, 1, 1], [], []>} : vector<8x72xbf16>, vector<72x512xbf16>, vector<8x512xf32> -> vector<8x512xf32>
    %c0_18 = arith.constant 0 : index
    %c0_19 = arith.constant 0 : index
    %99 = vector.load %arg3[%c0_18, %c0_19] : memref<8x1xf32, #tpu.memory_space<vmem>>, vector<8x1xf32>
    %100 = vector.broadcast %99 : vector<8x1xf32> to vector<8x512xf32>
    %101 = arith.addf %98, %100 : vector<8x512xf32>
    %cst_20 = arith.constant 0.000000e+00 : f32
    %102 = vector.broadcast %cst_20 : f32 to vector<8x512xf32>
    %103 = arith.maximumf %101, %102 : vector<8x512xf32>
    %104 = vector.extract_strided_slice %103 {offsets = [0, 1], sizes = [8, 511], strides = [1, 1]} : vector<8x512xf32> to vector<8x511xf32>
    %105 = vector.extract_strided_slice %103 {offsets = [0, 0], sizes = [8, 1], strides = [1, 1]} : vector<8x512xf32> to vector<8x1xf32>
    %106 = tpu.concatenate %104, %105 in 1 : vector<8x511xf32>, vector<8x1xf32> -> vector<8x512xf32>
    %cst_21 = arith.constant 0.000000e+00 : f32
    %107 = vector.shape_cast %10 : vector<1x512xi1> to vector<1x512xi1>
    %108 = vector.broadcast %107 : vector<1x512xi1> to vector<8x512xi1>
    %109 = vector.broadcast %cst_21 : f32 to vector<8x512xf32>
    %110 = arith.select %108, %106, %109 : vector<8x512xi1>, vector<8x512xf32>
    %111 = arith.maximumf %103, %110 : vector<8x512xf32>
    %112 = vector.extract_strided_slice %111 {offsets = [0, 16], sizes = [8, 496], strides = [1, 1]} : vector<8x512xf32> to vector<8x496xf32>
    %113 = vector.extract_strided_slice %111 {offsets = [0, 0], sizes = [8, 16], strides = [1, 1]} : vector<8x512xf32> to vector<8x16xf32>
    %114 = tpu.concatenate %112, %113 in 1 : vector<8x496xf32>, vector<8x16xf32> -> vector<8x512xf32>
    %cst_22 = arith.constant 0.000000e+00 : f32
    %115 = vector.shape_cast %14 : vector<1x512xi1> to vector<1x512xi1>
    %116 = vector.broadcast %115 : vector<1x512xi1> to vector<8x512xi1>
    %117 = vector.broadcast %cst_22 : f32 to vector<8x512xf32>
    %118 = arith.select %116, %114, %117 : vector<8x512xi1>, vector<8x512xf32>
    %119 = arith.maximumf %111, %118 : vector<8x512xf32>
    %120 = arith.truncf %119 : vector<8x512xf32> to vector<8x512xbf16>
    %c0_23 = arith.constant 0 : index
    %c0_24 = arith.constant 0 : index
    %121 = vector.load %arg6[%c0_23, %c0_24] : memref<512x128xbf16, #tpu.memory_space<vmem>>, vector<512x128xbf16>
    %cst_25 = arith.constant dense<0.000000e+00> : vector<8x128xf32>
    %122 = tpu.matmul %120, %121, %cst_25 {dimension_numbers = #tpu.dot_dimension_numbers<[1], [0], [0], [1], [0, 0, 1, 1], [], []>} : vector<8x512xbf16>, vector<512x128xbf16>, vector<8x128xf32> -> vector<8x128xf32>
    %123 = vector.extract_strided_slice %122 {offsets = [0, 119], sizes = [8, 9], strides = [1, 1]} : vector<8x128xf32> to vector<8x9xf32>
    %124 = vector.extract_strided_slice %122 {offsets = [0, 0], sizes = [8, 119], strides = [1, 1]} : vector<8x128xf32> to vector<8x119xf32>
    %125 = tpu.concatenate %123, %124 in 1 : vector<8x9xf32>, vector<8x119xf32> -> vector<8x128xf32>
    %cst_26 = arith.constant 0.000000e+00 : f32
    %126 = vector.shape_cast %34 : vector<1x128xi1> to vector<1x128xi1>
    %127 = vector.broadcast %126 : vector<1x128xi1> to vector<8x128xi1>
    %128 = vector.broadcast %cst_26 : f32 to vector<8x128xf32>
    %129 = arith.select %127, %125, %128 : vector<8x128xi1>, vector<8x128xf32>
    %130 = vector.extract_strided_slice %122 {offsets = [0, 120], sizes = [8, 8], strides = [1, 1]} : vector<8x128xf32> to vector<8x8xf32>
    %131 = vector.extract_strided_slice %122 {offsets = [0, 0], sizes = [8, 120], strides = [1, 1]} : vector<8x128xf32> to vector<8x120xf32>
    %132 = tpu.concatenate %130, %131 in 1 : vector<8x8xf32>, vector<8x120xf32> -> vector<8x128xf32>
    %cst_27 = arith.constant 0.000000e+00 : f32
    %133 = vector.shape_cast %31 : vector<1x128xi1> to vector<1x128xi1>
    %134 = vector.broadcast %133 : vector<1x128xi1> to vector<8x128xi1>
    %135 = vector.broadcast %cst_27 : f32 to vector<8x128xf32>
    %136 = arith.select %134, %132, %135 : vector<8x128xi1>, vector<8x128xf32>
    %137 = vector.extract_strided_slice %122 {offsets = [0, 121], sizes = [8, 7], strides = [1, 1]} : vector<8x128xf32> to vector<8x7xf32>
    %138 = vector.extract_strided_slice %122 {offsets = [0, 0], sizes = [8, 121], strides = [1, 1]} : vector<8x128xf32> to vector<8x121xf32>
    %139 = tpu.concatenate %137, %138 in 1 : vector<8x7xf32>, vector<8x121xf32> -> vector<8x128xf32>
    %cst_28 = arith.constant 0.000000e+00 : f32
    %140 = vector.shape_cast %35 : vector<1x128xi1> to vector<1x128xi1>
    %141 = vector.broadcast %140 : vector<1x128xi1> to vector<8x128xi1>
    %142 = vector.broadcast %cst_28 : f32 to vector<8x128xf32>
    %143 = arith.select %141, %139, %142 : vector<8x128xi1>, vector<8x128xf32>
    %144 = vector.extract_strided_slice %122 {offsets = [0, 127], sizes = [8, 1], strides = [1, 1]} : vector<8x128xf32> to vector<8x1xf32>
    %145 = vector.extract_strided_slice %122 {offsets = [0, 0], sizes = [8, 127], strides = [1, 1]} : vector<8x128xf32> to vector<8x127xf32>
    %146 = tpu.concatenate %144, %145 in 1 : vector<8x1xf32>, vector<8x127xf32> -> vector<8x128xf32>
    %cst_29 = arith.constant 0.000000e+00 : f32
    %147 = vector.shape_cast %27 : vector<1x128xi1> to vector<1x128xi1>
    %148 = vector.broadcast %147 : vector<1x128xi1> to vector<8x128xi1>
    %149 = vector.broadcast %cst_29 : f32 to vector<8x128xf32>
    %150 = arith.select %148, %146, %149 : vector<8x128xi1>, vector<8x128xf32>
    %151 = vector.extract_strided_slice %122 {offsets = [0, 1], sizes = [8, 127], strides = [1, 1]} : vector<8x128xf32> to vector<8x127xf32>
    %152 = vector.extract_strided_slice %122 {offsets = [0, 0], sizes = [8, 1], strides = [1, 1]} : vector<8x128xf32> to vector<8x1xf32>
    %153 = tpu.concatenate %151, %152 in 1 : vector<8x127xf32>, vector<8x1xf32> -> vector<8x128xf32>
    %cst_30 = arith.constant 0.000000e+00 : f32
    %154 = vector.shape_cast %29 : vector<1x128xi1> to vector<1x128xi1>
    %155 = vector.broadcast %154 : vector<1x128xi1> to vector<8x128xi1>
    %156 = vector.broadcast %cst_30 : f32 to vector<8x128xf32>
    %157 = arith.select %155, %153, %156 : vector<8x128xi1>, vector<8x128xf32>
    %158 = vector.extract_strided_slice %122 {offsets = [0, 7], sizes = [8, 121], strides = [1, 1]} : vector<8x128xf32> to vector<8x121xf32>
    %159 = vector.extract_strided_slice %122 {offsets = [0, 0], sizes = [8, 7], strides = [1, 1]} : vector<8x128xf32> to vector<8x7xf32>
    %160 = tpu.concatenate %158, %159 in 1 : vector<8x121xf32>, vector<8x7xf32> -> vector<8x128xf32>
    %cst_31 = arith.constant 0.000000e+00 : f32
    %161 = vector.shape_cast %36 : vector<1x128xi1> to vector<1x128xi1>
    %162 = vector.broadcast %161 : vector<1x128xi1> to vector<8x128xi1>
    %163 = vector.broadcast %cst_31 : f32 to vector<8x128xf32>
    %164 = arith.select %162, %160, %163 : vector<8x128xi1>, vector<8x128xf32>
    %165 = vector.extract_strided_slice %122 {offsets = [0, 8], sizes = [8, 120], strides = [1, 1]} : vector<8x128xf32> to vector<8x120xf32>
    %166 = vector.extract_strided_slice %122 {offsets = [0, 0], sizes = [8, 8], strides = [1, 1]} : vector<8x128xf32> to vector<8x8xf32>
    %167 = tpu.concatenate %165, %166 in 1 : vector<8x120xf32>, vector<8x8xf32> -> vector<8x128xf32>
    %cst_32 = arith.constant 0.000000e+00 : f32
    %168 = vector.shape_cast %33 : vector<1x128xi1> to vector<1x128xi1>
    %169 = vector.broadcast %168 : vector<1x128xi1> to vector<8x128xi1>
    %170 = vector.broadcast %cst_32 : f32 to vector<8x128xf32>
    %171 = arith.select %169, %167, %170 : vector<8x128xi1>, vector<8x128xf32>
    %172 = vector.extract_strided_slice %122 {offsets = [0, 9], sizes = [8, 119], strides = [1, 1]} : vector<8x128xf32> to vector<8x119xf32>
    %173 = vector.extract_strided_slice %122 {offsets = [0, 0], sizes = [8, 9], strides = [1, 1]} : vector<8x128xf32> to vector<8x9xf32>
    %174 = tpu.concatenate %172, %173 in 1 : vector<8x119xf32>, vector<8x9xf32> -> vector<8x128xf32>
    %cst_33 = arith.constant 0.000000e+00 : f32
    %175 = vector.shape_cast %37 : vector<1x128xi1> to vector<1x128xi1>
    %176 = vector.broadcast %175 : vector<1x128xi1> to vector<8x128xi1>
    %177 = vector.broadcast %cst_33 : f32 to vector<8x128xf32>
    %178 = arith.select %176, %174, %177 : vector<8x128xi1>, vector<8x128xf32>
    %179 = tpu.concatenate %129, %136, %143, %150, %122, %157, %164, %171, %178 in 0 : vector<8x128xf32>, vector<8x128xf32>, vector<8x128xf32>, vector<8x128xf32>, vector<8x128xf32>, vector<8x128xf32>, vector<8x128xf32>, vector<8x128xf32>, vector<8x128xf32> -> vector<72x128xf32>
    %c0_34 = arith.constant 0 : index
    %c0_35 = arith.constant 0 : index
    %180 = vector.load %arg4[%c0_34, %c0_35] : memref<16x72xbf16, #tpu.memory_space<vmem>>, vector<16x72xbf16>
    %181 = arith.truncf %179 : vector<72x128xf32> to vector<72x128xbf16>
    %cst_36 = arith.constant dense<0.000000e+00> : vector<16x128xf32>
    %182 = tpu.matmul %180, %181, %cst_36 {dimension_numbers = #tpu.dot_dimension_numbers<[1], [0], [0], [1], [0, 0, 1, 1], [], []>} : vector<16x72xbf16>, vector<72x128xbf16>, vector<16x128xf32> -> vector<16x128xf32>
    %c0_37 = arith.constant 0 : index
    %c0_38 = arith.constant 0 : index
    %183 = vector.load %arg5[%c0_37, %c0_38] : memref<16x1xf32, #tpu.memory_space<vmem>>, vector<16x1xf32>
    %184 = vector.broadcast %183 : vector<16x1xf32> to vector<16x128xf32>
    %185 = arith.addf %182, %184 : vector<16x128xf32>
    %cst_39 = arith.constant 0.000000e+00 : f32
    %186 = vector.broadcast %cst_39 : f32 to vector<16x128xf32>
    %187 = arith.maximumf %185, %186 : vector<16x128xf32>
    %188 = arith.truncf %187 : vector<16x128xf32> to vector<16x128xbf16>
    %c0_40 = arith.constant 0 : index
    %c0_41 = arith.constant 0 : index
    %189 = vector.load %arg7[%c0_40, %c0_41] : memref<128x98xbf16, #tpu.memory_space<vmem>>, vector<128x98xbf16>
    %cst_42 = arith.constant dense<0.000000e+00> : vector<16x98xf32>
    %190 = tpu.matmul %188, %189, %cst_42 {dimension_numbers = #tpu.dot_dimension_numbers<[1], [0], [0], [1], [0, 0, 1, 1], [], []>} : vector<16x128xbf16>, vector<128x98xbf16>, vector<16x98xf32> -> vector<16x98xf32>
    %c0_43 = arith.constant 0 : index
    %c0_44 = arith.constant 0 : index
    %c0_45 = arith.constant 0 : index
    %191 = vector.load %arg8[%c0_43, %c0_44, %c0_45] : memref<1x16x98xf32, #tpu.memory_space<vmem>>, vector<1x16x98xf32>
    %192 = vector.shape_cast %191 : vector<1x16x98xf32> to vector<16x98xf32>
    %193 = vector.shape_cast %190 : vector<16x98xf32> to vector<1x16x98xf32>
    tpu.vector_store %arg8[%c0_43, %c0_44, %c0_45], %193 {strides = array<i32>} : memref<1x16x98xf32, #tpu.memory_space<vmem>>, vector<1x16x98xf32>,
    return
  }
  func.func @transform_0(%arg0: i32) -> (i32, i32) {
    %c0_i32 = arith.constant 0 : i32
    %c0_i32_0 = arith.constant 0 : i32
    return %c0_i32, %arg0 : i32, i32
  }
  func.func @transform_1(%arg0: i32) -> (i32, i32) {
    %c0_i32 = arith.constant 0 : i32
    %c0_i32_0 = arith.constant 0 : i32
    %c0_i32_1 = arith.constant 0 : i32
    return %c0_i32, %c0_i32_0 : i32, i32
  }
  func.func @transform_2(%arg0: i32) -> (i32, i32) {
    %c0_i32 = arith.constant 0 : i32
    %c0_i32_0 = arith.constant 0 : i32
    %c0_i32_1 = arith.constant 0 : i32
    return %c0_i32, %c0_i32_0 : i32, i32
  }
  func.func @transform_3(%arg0: i32) -> (i32, i32) {
    %c0_i32 = arith.constant 0 : i32
    %c0_i32_0 = arith.constant 0 : i32
    %c0_i32_1 = arith.constant 0 : i32
    return %c0_i32, %c0_i32_0 : i32, i32
  }
  func.func @transform_4(%arg0: i32) -> (i32, i32) {
    %c0_i32 = arith.constant 0 : i32
    %c0_i32_0 = arith.constant 0 : i32
    %c0_i32_1 = arith.constant 0 : i32
    return %c0_i32, %c0_i32_0 : i32, i32
  }
  func.func @transform_5(%arg0: i32) -> (i32, i32) {
    %c0_i32 = arith.constant 0 : i32
    %c0_i32_0 = arith.constant 0 : i32
    %c0_i32_1 = arith.constant 0 : i32
    return %c0_i32, %c0_i32_0 : i32, i32
  }
  func.func @transform_6(%arg0: i32) -> (i32, i32) {
    %c0_i32 = arith.constant 0 : i32
    %c0_i32_0 = arith.constant 0 : i32
    %c0_i32_1 = arith.constant 0 : i32
    return %c0_i32, %c0_i32_0 : i32, i32
  }
  func.func @transform_7(%arg0: i32) -> (i32, i32, i32) {
    %c0_i32 = arith.constant 0 : i32
    %c0_i32_0 = arith.constant 0 : i32
    %c0_i32_1 = arith.constant 0 : i32
    return %arg0, %c0_i32, %c0_i32_0 : i32, i32, i32
  }
}

</mosaic_0001>

<llo_original>
// kernel: tpu_custom_call.1
$region0: #{tpu_custom_call.1}
  #allocation0 [shape = 'u32[]', space=smem, size = 0x4, offset = 0x4, fixed_abs, tag = 'smem constant byte address 0x4 - core index']
  #allocation1 [shape = 'u32[144,128]{1,0:T(1,128)}', space=vmem, size = 0x12000, scoped, tag = 'internal scratch']
  %s0 = inlined_call_operand.hbm [shape: f32[8,128], index: 0, kind: input, shape index: {}]
  %s1 = inlined_call_operand.hbm [shape: f32[8,128], index: 1, kind: output, shape index: {}]
  %s2 = sld [smem:[#allocation0]]
  $region18: #{tpu_custom_call.1} parent=0
    _
  %s4 = ssub.s32 1, %s2
  %s5 = scalar_select 0, %s4, %s2
  $region1: #{tpu_custom_call.1} parent=0
    #allocation2 [shape = 'u8[4096]{0}', space=vmem, size = 0x1000, scoped, tag = 'input window, operand 0, single buffered']
    #allocation3 [shape = 's32[1]{0}', space=sflag, size = 0x4, scoped, tag = 'scoped memory for tpu_custom_call.1']
    #allocation4 [shape = 's32[1]{0}', space=sflag, size = 0x4, scoped, tag = 'scoped memory for tpu_custom_call.1']
    #allocation5 [shape = 'u8[4096]{0}', space=vmem, size = 0x1000, scoped, tag = 'output window, operand 0, single buffered']
    %6 = vsyncpa [#allocation3], 0
    %7 = vsyncpa [#allocation4], 0
    // Predicated region
    $region2: #{tpu_custom_call.1} parent=1 // pred_check
      _
    $region3: #{tpu_custom_call.1} parent=1 // pred_check_branch
      %9 = sbr.rel (0) target = $region5
    $region4: #{tpu_custom_call.1} parent=1 // pred_region
      %s11 = ssub.s32 128, 128
      %12 = vsyncadd [#allocation3], %s11
      %s14 = sshll.u32 [#allocation2], 4
      %s15 = int_to_ptr.vmem [resolvable:$true] %s14
      %17 = dma.hbm_to_vmem [thread:$0]  %s0, 128, %s15, [#allocation3]
    $region5: #{tpu_custom_call.1} parent=1 // pred_fallthru
      _
    // Predicated region
    $region6: #{tpu_custom_call.1} parent=1 // pred_check
      _
    $region7: #{tpu_custom_call.1} parent=1 // pred_check_branch
      %19 = sbr.rel (0) target = $region9
    $region8: #{tpu_custom_call.1} parent=1 // pred_region
      %20 = dma.done [#allocation3], 128
    $region9: #{tpu_custom_call.1} parent=1 // pred_fallthru
      _
    %v21 = vld [vmem:[#allocation2] sm:$0xff]
    %22 = vrot.lane.b32.xlu0 %v21, 1
    %v23 = vpop.permute.xlu0 %22
    %24 = vst [vmem:[#allocation5] sm:$0xff] %v23
    // Predicated region
    $region10: #{tpu_custom_call.1} parent=1 // pred_check
      _
    $region11: #{tpu_custom_call.1} parent=1 // pred_check_branch
      %26 = sbr.rel (0) target = $region13
    $region12: #{tpu_custom_call.1} parent=1 // pred_region
      %s28 = ssub.s32 128, 128
      %29 = vsyncadd [#allocation4], %s28
      %s31 = sshll.u32 [#allocation5], 4
      %s32 = int_to_ptr.vmem [resolvable:$true] %s31
      %34 = dma.vmem_to_hbm [thread:$0]  %s32, 128, %s1, [#allocation4]
    $region13: #{tpu_custom_call.1} parent=1 // pred_fallthru
      _
    // Predicated region
    $region14: #{tpu_custom_call.1} parent=1 // pred_check
      _
    $region15: #{tpu_custom_call.1} parent=1 // pred_check_branch
      %36 = sbr.rel (0) target = $region17
    $region16: #{tpu_custom_call.1} parent=1 // pred_region
      %37 = dma.done [#allocation4], 128
    $region17: #{tpu_custom_call.1} parent=1 // pred_fallthru
      _
    %38 = vsyncpa [#allocation3], 1
    %39 = vsyncpa [#allocation4], 1

// kernel: feature_extractor_forward.1
$region0: #{feature_extractor_forward.1}
  #allocation0 [shape = 'u32[]', space=smem, size = 0x4, offset = 0x4, fixed_abs, tag = 'smem constant byte address 0x4 - core index']
  #allocation1 [shape = 'u32[144,128]{1,0:T(1,128)}', space=vmem, size = 0x12000, scoped, tag = 'internal scratch']
  %s0 = inlined_call_operand.vmem [shape: f32[8,1024], index: 0, kind: input, shape index: {}]
  %s1 = inlined_call_operand.vmem [shape: bf16[8,72], index: 1, kind: input, shape index: {}]
  %s2 = inlined_call_operand.vmem [shape: f32[8,1], index: 2, kind: input, shape index: {}]
  %s3 = inlined_call_operand.vmem [shape: bf16[16,72], index: 3, kind: input, shape index: {}]
  %s4 = inlined_call_operand.vmem [shape: f32[16,1], index: 4, kind: input, shape index: {}]
  %s5 = inlined_call_operand.vmem [shape: bf16[512,128], index: 5, kind: input, shape index: {}]
  %s6 = inlined_call_operand.vmem [shape: bf16[128,98], index: 6, kind: input, shape index: {}]
  %s7 = inlined_call_operand.vmem [shape: f32[2,16,98], index: 7, kind: output, shape index: {}]
  %s8 = sld [smem:[#allocation0]]
  $region61: #{feature_extractor_forward.1} parent=0
    _
  %s10 = ssub.s32 1, %s8
  %s11 = scalar_select 0, %s10, %s8
  loop: start=0, step=1, limit=4
  $region2: #{feature_extractor_forward.1} parent=0 // loop_pre_header
    _
  $region3: #{feature_extractor_forward.1} parent=0 // loop_header
    %s13 = sphi 0, %s17
    %p14 = scmp.ge.s32.totalorder %s13, 4
    %s23 = sphi 0, %s25
    %s26 = sphi 0, %s23
    %s27 = sphi 0, %s26
    %s43 = sphi 0, %s27
    %s47 = sphi 0, %s47
    %s49 = sphi 0, %s47
    %s50 = sphi 0, %s49
    %s64 = sphi 0, %s50
    %s68 = sphi 0, %s68
    %s70 = sphi 0, %s68
    %s71 = sphi 0, %s70
    %s85 = sphi 0, %s71
    %s89 = sphi 0, %s89
    %s91 = sphi 0, %s89
    %s92 = sphi 0, %s91
    %s106 = sphi 0, %s92
    %s110 = sphi 0, %s110
    %s112 = sphi 0, %s110
    %s113 = sphi 0, %s112
    %s127 = sphi 0, %s113
    %s131 = sphi 0, %s131
    %s133 = sphi 0, %s131
    %s134 = sphi 0, %s133
    %s148 = sphi 0, %s134
    %s152 = sphi 0, %s152
    %s154 = sphi 0, %s152
    %s155 = sphi 0, %s154
    %s169 = sphi 0, %s155
    %s175 = sphi 0, %s177
    %s178 = sphi 0, %s175
    %s179 = sphi 0, %s178
    %s195 = sphi 0, %s179
  $region4: #{feature_extractor_forward.1} parent=0 // loop_header_branch
    %16 = sbr.rel (%p14) target = $region8
  $region5: #{feature_extractor_forward.1} parent=0 // loop_body
    %s18 = ssub.s32 %s13, 1
    %s19 = ssub.s32 %s13, 2
    %s20 = sadd.s32 %s13, 1
    %s21 = ssub.s32 %s13, %s20
    %p22 = scmp.eq.s32.totalorder %s21, 0
    %s24 = sadd.s32 %s23, 1
    %s25 = scalar_select %p22, %s23, %s24
    %p28 = pneg %p22
    %p29 = scmp.eq.s32.totalorder %s13, 1
    %p30 = por %p28, %p29
    %p31 = scmp.ne.s32.totalorder %s23, %s26
    %p32 = scmp.eq.s32.totalorder %s13, 0
    %p33 = por %p31, %p32
    %p34 = scmp.ne.s32.totalorder %s23, %s26
    %p35 = scmp.eq.s32.totalorder %s18, 1
    %p36 = por %p34, %p35
    %p37 = scmp.ne.s32.totalorder %s26, %s27
    %p38 = scmp.eq.s32.totalorder %s18, 0
    %p39 = por %p37, %p38
    %p40 = scmp.ne.s32.totalorder %s26, %s27
    %p41 = scmp.eq.s32.totalorder %s19, 1
    %p42 = por %p40, %p41
    %p44 = scmp.ne.s32.totalorder %s27, %s43
    %p45 = scmp.eq.s32.totalorder %s19, 0
    %p46 = por %p44, %p45
    %s48 = sadd.s32 %s47, 1
    %p51 = scmp.eq.s32.totalorder %s13, 1
    %p52 = scmp.ne.s32.totalorder %s47, %s49
    %p53 = scmp.eq.s32.totalorder %s13, 0
    %p54 = por %p52, %p53
    %p55 = scmp.ne.s32.totalorder %s47, %s49
    %p56 = scmp.eq.s32.totalorder %s18, 1
    %p57 = por %p55, %p56
    %p58 = scmp.ne.s32.totalorder %s49, %s50
    %p59 = scmp.eq.s32.totalorder %s18, 0
    %p60 = por %p58, %p59
    %p61 = scmp.ne.s32.totalorder %s49, %s50
    %p62 = scmp.eq.s32.totalorder %s19, 1
    %p63 = por %p61, %p62
    %p65 = scmp.ne.s32.totalorder %s50, %s64
    %p66 = scmp.eq.s32.totalorder %s19, 0
    %p67 = por %p65, %p66
    %s69 = sadd.s32 %s68, 1
    %p72 = scmp.eq.s32.totalorder %s13, 1
    %p73 = scmp.ne.s32.totalorder %s68, %s70
    %p74 = scmp.eq.s32.totalorder %s13, 0
    %p75 = por %p73, %p74
    %p76 = scmp.ne.s32.totalorder %s68, %s70
    %p77 = scmp.eq.s32.totalorder %s18, 1
    %p78 = por %p76, %p77
    %p79 = scmp.ne.s32.totalorder %s70, %s71
    %p80 = scmp.eq.s32.totalorder %s18, 0
    %p81 = por %p79, %p80
    %p82 = scmp.ne.s32.totalorder %s70, %s71
    %p83 = scmp.eq.s32.totalorder %s19, 1
    %p84 = por %p82, %p83
    %p86 = scmp.ne.s32.totalorder %s71, %s85
    %p87 = scmp.eq.s32.totalorder %s19, 0
    %p88 = por %p86, %p87
    %s90 = sadd.s32 %s89, 1
    %p93 = scmp.eq.s32.totalorder %s13, 1
    %p94 = scmp.ne.s32.totalorder %s89, %s91
    %p95 = scmp.eq.s32.totalorder %s13, 0
    %p96 = por %p94, %p95
    %p97 = scmp.ne.s32.totalorder %s89, %s91
    %p98 = scmp.eq.s32.totalorder %s18, 1
    %p99 = por %p97, %p98
    %p100 = scmp.ne.s32.totalorder %s91, %s92
    %p101 = scmp.eq.s32.totalorder %s18, 0
    %p102 = por %p100, %p101
    %p103 = scmp.ne.s32.totalorder %s91, %s92
    %p104 = scmp.eq.s32.totalorder %s19, 1
    %p105 = por %p103, %p104
    %p107 = scmp.ne.s32.totalorder %s92, %s106
    %p108 = scmp.eq.s32.totalorder %s19, 0
    %p109 = por %p107, %p108
    %s111 = sadd.s32 %s110, 1
    %p114 = scmp.eq.s32.totalorder %s13, 1
    %p115 = scmp.ne.s32.totalorder %s110, %s112
    %p116 = scmp.eq.s32.totalorder %s13, 0
    %p117 = por %p115, %p116
    %p118 = scmp.ne.s32.totalorder %s110, %s112
    %p119 = scmp.eq.s32.totalorder %s18, 1
    %p120 = por %p118, %p119
    %p121 = scmp.ne.s32.totalorder %s112, %s113
    %p122 = scmp.eq.s32.totalorder %s18, 0
    %p123 = por %p121, %p122
    %p124 = scmp.ne.s32.totalorder %s112, %s113
    %p125 = scmp.eq.s32.totalorder %s19, 1
    %p126 = por %p124, %p125
    %p128 = scmp.ne.s32.totalorder %s113, %s127
    %p129 = scmp.eq.s32.totalorder %s19, 0
    %p130 = por %p128, %p129
    %s132 = sadd.s32 %s131, 1
    %p135 = scmp.eq.s32.totalorder %s13, 1
    %p136 = scmp.ne.s32.totalorder %s131, %s133
    %p137 = scmp.eq.s32.totalorder %s13, 0
    %p138 = por %p136, %p137
    %p139 = scmp.ne.s32.totalorder %s131, %s133
    %p140 = scmp.eq.s32.totalorder %s18, 1
    %p141 = por %p139, %p140
    %p142 = scmp.ne.s32.totalorder %s133, %s134
    %p143 = scmp.eq.s32.totalorder %s18, 0
    %p144 = por %p142, %p143
    %p145 = scmp.ne.s32.totalorder %s133, %s134
    %p146 = scmp.eq.s32.totalorder %s19, 1
    %p147 = por %p145, %p146
    %p149 = scmp.ne.s32.totalorder %s134, %s148
    %p150 = scmp.eq.s32.totalorder %s19, 0
    %p151 = por %p149, %p150
    %s153 = sadd.s32 %s152, 1
    %p156 = scmp.eq.s32.totalorder %s13, 1
    %p157 = scmp.ne.s32.totalorder %s152, %s154
    %p158 = scmp.eq.s32.totalorder %s13, 0
    %p159 = por %p157, %p158
    %p160 = scmp.ne.s32.totalorder %s152, %s154
    %p161 = scmp.eq.s32.totalorder %s18, 1
    %p162 = por %p160, %p161
    %p163 = scmp.ne.s32.totalorder %s154, %s155
    %p164 = scmp.eq.s32.totalorder %s18, 0
    %p165 = por %p163, %p164
    %p166 = scmp.ne.s32.totalorder %s154, %s155
    %p167 = scmp.eq.s32.totalorder %s19, 1
    %p168 = por %p166, %p167
    %p170 = scmp.ne.s32.totalorder %s155, %s169
    %p171 = scmp.eq.s32.totalorder %s19, 0
    %p172 = por %p170, %p171
    %s173 = ssub.s32 %s13, %s20
    %p174 = scmp.eq.s32.totalorder %s173, 0
    %s176 = sadd.s32 %s175, 1
    %s177 = scalar_select %p174, %s175, %s176
    %p180 = pneg %p174
    %p181 = scmp.eq.s32.totalorder %s13, 1
    %p182 = por %p180, %p181
    %p183 = scmp.ne.s32.totalorder %s175, %s178
    %p184 = scmp.eq.s32.totalorder %s13, 0
    %p185 = por %p183, %p184
    %p186 = scmp.ne.s32.totalorder %s175, %s178
    %p187 = scmp.eq.s32.totalorder %s18, 1
    %p188 = por %p186, %p187
    %p189 = scmp.ne.s32.totalorder %s178, %s179
    %p190 = scmp.eq.s32.totalorder %s18, 0
    %p191 = por %p189, %p190
    %p192 = scmp.ne.s32.totalorder %s178, %s179
    %p193 = scmp.eq.s32.totalorder %s19, 1
    %p194 = por %p192, %p193
    %p196 = scmp.ne.s32.totalorder %s179, %s195
    %p197 = scmp.eq.s32.totalorder %s19, 0
    %p198 = por %p196, %p197
    %p199 = scmp.le.s32.totalorder 1, %s13
    %p200 = scmp.lt.s32.totalorder %s13, 3
    %p201 = pnand %p199, %p200
    %p202 = pneg %p201
    // Predicated region
    $region9: #{feature_extractor_forward.1} parent=5 // pred_check
      _
    $region10: #{feature_extractor_forward.1} parent=5 // pred_check_branch
      %204 = sbr.rel (%p201) target = $region12
    $region11: #{feature_extractor_forward.1} parent=5 // pred_region
      %s205 = ssub.s32 %s13, 1
      // Predicated region
      $region13: #{feature_extractor_forward.1} parent=11 // pred_check
        %p206 = pneg %p60
      $region14: #{feature_extractor_forward.1} parent=11 // pred_check_branch
        %208 = sbr.rel (%p206) target = $region16
      $region15: #{feature_extractor_forward.1} parent=11 // pred_region
        _
      $region16: #{feature_extractor_forward.1} parent=11 // pred_fallthru
        _
      // Predicated region
      $region17: #{feature_extractor_forward.1} parent=11 // pred_check
        %p209 = pneg %p81
      $region18: #{feature_extractor_forward.1} parent=11 // pred_check_branch
        %211 = sbr.rel (%p209) target = $region20
      $region19: #{feature_extractor_forward.1} parent=11 // pred_region
        _
      $region20: #{feature_extractor_forward.1} parent=11 // pred_fallthru
        _
      // Predicated region
      $region21: #{feature_extractor_forward.1} parent=11 // pred_check
        %p212 = pneg %p102
      $region22: #{feature_extractor_forward.1} parent=11 // pred_check_branch
        %214 = sbr.rel (%p212) target = $region24
      $region23: #{feature_extractor_forward.1} parent=11 // pred_region
        _
      $region24: #{feature_extractor_forward.1} parent=11 // pred_fallthru
        _
      // Predicated region
      $region25: #{feature_extractor_forward.1} parent=11 // pred_check
        %p215 = pneg %p123
      $region26: #{feature_extractor_forward.1} parent=11 // pred_check_branch
        %217 = sbr.rel (%p215) target = $region28
      $region27: #{feature_extractor_forward.1} parent=11 // pred_region
        _
      $region28: #{feature_extractor_forward.1} parent=11 // pred_fallthru
        _
      // Predicated region
      $region29: #{feature_extractor_forward.1} parent=11 // pred_check
        %p218 = pneg %p144
      $region30: #{feature_extractor_forward.1} parent=11 // pred_check_branch
        %220 = sbr.rel (%p218) target = $region32
      $region31: #{feature_extractor_forward.1} parent=11 // pred_region
        _
      $region32: #{feature_extractor_forward.1} parent=11 // pred_fallthru
        _
      // Predicated region
      $region33: #{feature_extractor_forward.1} parent=11 // pred_check
        %p221 = pneg %p165
      $region34: #{feature_extractor_forward.1} parent=11 // pred_check_branch
        %223 = sbr.rel (%p221) target = $region36
      $region35: #{feature_extractor_forward.1} parent=11 // pred_region
        _
      $region36: #{feature_extractor_forward.1} parent=11 // pred_fallthru
        _
    $region12: #{feature_extractor_forward.1} parent=5 // pred_fallthru
      _
    %p224 = scmp.lt.s32.totalorder %s13, 2
    // Predicated region
    $region37: #{feature_extractor_forward.1} parent=5 // pred_check
      %p225 = pneg %p224
    $region38: #{feature_extractor_forward.1} parent=5 // pred_check_branch
      %227 = sbr.rel (%p225) target = $region40
    $region39: #{feature_extractor_forward.1} parent=5 // pred_region
      // Predicated region
      $region41: #{feature_extractor_forward.1} parent=39 // pred_check
        %p228 = pneg %p33
      $region42: #{feature_extractor_forward.1} parent=39 // pred_check_branch
        %230 = sbr.rel (%p228) target = $region44
      $region43: #{feature_extractor_forward.1} parent=39 // pred_region
        %s231 = smul.u32 4, %s13
        %p232 = scmp.lt.s32.totalorder %s231, 7
        %s233 = scalar_select %p232, %s231, 7
        %s234 = smul.addr %s233, 8
        %s235 = scalar_lea.vmem %s0, %s234
        %s236 = smul.u32 4, %s13
      $region44: #{feature_extractor_forward.1} parent=39 // pred_fallthru
        _
    $region40: #{feature_extractor_forward.1} parent=5 // pred_fallthru
      _
    %p237 = scmp.le.s32.totalorder 1, %s13
    %p238 = scmp.lt.s32.totalorder %s13, 3
    %p239 = pnand %p237, %p238
    %p240 = pneg %p239
    // Predicated region
    $region45: #{feature_extractor_forward.1} parent=5 // pred_check
      _
    $region46: #{feature_extractor_forward.1} parent=5 // pred_check_branch
      %242 = sbr.rel (%p239) target = $region48
    $region47: #{feature_extractor_forward.1} parent=5 // pred_region
      %s243 = ssub.s32 %s13, 1
      %s244 = smul.u32 4, %s18
      %p245 = scmp.lt.s32.totalorder %s244, 7
      %s246 = scalar_select %p245, %s244, 7
      %s247 = smul.addr %s246, 8
      %s248 = scalar_lea.vmem %s0, %s247
      %p249 = pneg %p39
      %p250 = pneg %p36
      %p251 = pneg %p60
      %p252 = pneg %p57
      %p253 = pneg %p81
      %p254 = pneg %p78
      %p255 = pneg %p102
      %p256 = pneg %p99
      %p257 = pneg %p123
      %p258 = pneg %p120
      %p259 = pneg %p144
      %p260 = pneg %p141
      %p261 = pneg %p165
      %p262 = pneg %p162
      %p263 = pneg %p191
      %p264 = pneg %p188
      %p265 = scmp.lt.s32.totalorder %s18, 1
      %s266 = scalar_select %p265, %s18, 1
      %s267 = smul.addr %s266, 2
      %s268 = smul.addr %s267, 8
      %s269 = scalar_lea.vmem %s7, %s268
      %s270 = smul.u32 4, %s18
      %p271 = scmp.lt.s32.totalorder %s270, 7
      %s272 = scalar_select %p271, %s270, 7
      %s273 = smul.addr %s272, 8
      %s274 = scalar_lea.vmem %s0, %s273
      %s275 = smul.u32 4, %s18
      %p276 = scmp.lt.s32.totalorder %s18, 1
      %s277 = scalar_select %p276, %s18, 1
      %s278 = smul.addr %s277, 2
      %s279 = smul.addr %s278, 8
      %s280 = scalar_lea.vmem %s7, %s279
      %v282 = vlaneseq
      %v283 = vand.u32 %v282, 127
      %v284 = vadd.s32 %v283, 128
      %v285 = vadd.s32 %v283, 256
      %v286 = vadd.s32 %v283, 384
      %v287 = vand.u32 %v283, 15
      %v288 = vand.u32 %v284, 15
      %v289 = vand.u32 %v285, 15
      %v290 = vand.u32 %v286, 15
      %v291 = vshra.s32 %v283, 4
      %v292 = vshra.s32 %v284, 4
      %v293 = vshra.s32 %v285, 4
      %v294 = vshra.s32 %v286, 4
      %v295 = vand.u32 %v291, 15
      %v296 = vand.u32 %v292, 15
      %v297 = vand.u32 %v293, 15
      %v298 = vand.u32 %v294, 15
      %vm299 = vcmp.ge.s32.totalorder %v287, 1
      %vm300 = vcmp.ge.s32.totalorder %v288, 1
      %vm301 = vcmp.ge.s32.totalorder %v289, 1
      %vm302 = vcmp.ge.s32.totalorder %v290, 1
      %vm303 = vcmp.le.s32.totalorder %v287, 14
      %vm304 = vcmp.le.s32.totalorder %v288, 14
      %vm305 = vcmp.le.s32.totalorder %v289, 14
      %vm306 = vcmp.le.s32.totalorder %v290, 14
      %vm307 = vcmp.ge.s32.totalorder %v295, 1
      %vm308 = vcmp.ge.s32.totalorder %v296, 1
      %vm309 = vcmp.ge.s32.totalorder %v297, 1
      %vm310 = vcmp.ge.s32.totalorder %v298, 1
      %vm311 = vcmp.le.s32.totalorder %v295, 14
      %vm312 = vcmp.le.s32.totalorder %v296, 14
      %vm313 = vcmp.le.s32.totalorder %v297, 14
      %vm314 = vcmp.le.s32.totalorder %v298, 14
      %vm315 = vmand %vm307, %vm299
      %vm316 = vmand %vm308, %vm300
      %vm317 = vmand %vm309, %vm301
      %vm318 = vmand %vm310, %vm302
      %vm319 = vmand %vm307, %vm303
      %vm320 = vmand %vm308, %vm304
      %vm321 = vmand %vm309, %vm305
      %vm322 = vmand %vm310, %vm306
      %vm323 = vmand %vm311, %vm299
      %vm324 = vmand %vm312, %vm300
      %vm325 = vmand %vm313, %vm301
      %vm326 = vmand %vm314, %vm302
      %vm327 = vmand %vm311, %vm303
      %vm328 = vmand %vm312, %vm304
      %vm329 = vmand %vm313, %vm305
      %vm330 = vmand %vm314, %vm306
      %v331 = vand.u32 %v283, 7
      %v332 = vshra.s32 %v283, 3
      %v333 = vand.u32 %v332, 7
      %vm334 = vcmp.ge.s32.totalorder %v331, 1
      %vm335 = vcmp.le.s32.totalorder %v331, 6
      %vm336 = vcmp.ge.s32.totalorder %v333, 1
      %vm337 = vcmp.le.s32.totalorder %v333, 6
      %vm338 = vmand %vm336, %vm334
      %vm339 = vmand %vm336, %vm335
      %vm340 = vmand %vm337, %vm334
      %vm341 = vmand %vm337, %vm335
      %v342 = vld [vmem:[%s274] sm:$0xff]
      %v343 = vld [vmem:[%s274 + $0x8] sm:$0xff]
      %v344 = vld [vmem:[%s274 + $0x10] sm:$0xff]
      %v345 = vld [vmem:[%s274 + $0x18] sm:$0xff]
      %347 = vrot.lane.b32.xlu0 %v345, 17
      %v348 = vpop.permute.xlu0 %347
      %353 = vrot.lane.b32.xlu0 %v342, 17
      %v354 = vpop.permute.xlu0 %353
      %355 = vrot.lane.b32.xlu0 %v343, 17
      %v356 = vpop.permute.xlu0 %355
      %357 = vrot.lane.b32.xlu0 %v344, 17
      %v358 = vpop.permute.xlu0 %357
      %vm359 = vcmask 138240
      %v360 = vsel %vm359, %v354, %v356
      %v361 = vsel %vm359, %v356, %v358
      %v362 = vsel %vm359, %v358, %v348
      %v367 = vsel %vm359, %v348, %v354
      %v368 = vsel %vm315, 1, 0
      %v369 = vsel %vm316, 1, 0
      %v370 = vsel %vm317, 1, 0
      %v371 = vsel %vm318, 1, 0
      %vm372 = vcmp.eq.s32.totalorder %v368, 1
      %vm373 = vcmp.eq.s32.totalorder %v369, 1
      %vm374 = vcmp.eq.s32.totalorder %v370, 1
      %vm375 = vcmp.eq.s32.totalorder %v371, 1
      %v376 = vsel %vm372, %v367, 0.0
      %v377 = vsel %vm373, %v360, 0.0
      %v378 = vsel %vm374, %v361, 0.0
      %v379 = vsel %vm375, %v362, 0.0
      %380 = vrot.lane.b32.xlu0 %v345, 16
      %v381 = vpop.permute.xlu0 %380
      %383 = vrot.lane.b32.xlu0 %v342, 16
      %v384 = vpop.permute.xlu0 %383
      %385 = vrot.lane.b32.xlu0 %v343, 16
      %v386 = vpop.permute.xlu0 %385
      %387 = vrot.lane.b32.xlu0 %v344, 16
      %v388 = vpop.permute.xlu0 %387
      %vm389 = vcmask 130048
      %v390 = vsel %vm389, %v384, %v386
      %v391 = vsel %vm389, %v386, %v388
      %v392 = vsel %vm389, %v388, %v381
      %v397 = vsel %vm389, %v381, %v384
      %v398 = vsel %vm307, 1, 0
      %v399 = vsel %vm308, 1, 0
      %v400 = vsel %vm309, 1, 0
      %v401 = vsel %vm310, 1, 0
      %vm402 = vcmp.eq.s32.totalorder %v398, 1
      %vm403 = vcmp.eq.s32.totalorder %v399, 1
      %vm404 = vcmp.eq.s32.totalorder %v400, 1
      %vm405 = vcmp.eq.s32.totalorder %v401, 1
      %v406 = vsel %vm402, %v397, 0.0
      %v407 = vsel %vm403, %v390, 0.0
      %v408 = vsel %vm404, %v391, 0.0
      %v409 = vsel %vm405, %v392, 0.0
      %410 = vrot.lane.b32.xlu0 %v345, 15
      %v411 = vpop.permute.xlu0 %410
      %413 = vrot.lane.b32.xlu0 %v342, 15
      %v414 = vpop.permute.xlu0 %413
      %415 = vrot.lane.b32.xlu0 %v343, 15
      %v416 = vpop.permute.xlu0 %415
      %417 = vrot.lane.b32.xlu0 %v344, 15
      %v418 = vpop.permute.xlu0 %417
      %vm419 = vcmask 121856
      %v420 = vsel %vm419, %v414, %v416
      %v421 = vsel %vm419, %v416, %v418
      %v422 = vsel %vm419, %v418, %v411
      %v427 = vsel %vm419, %v411, %v414
      %v428 = vsel %vm319, 1, 0
      %v429 = vsel %vm320, 1, 0
      %v430 = vsel %vm321, 1, 0
      %v431 = vsel %vm322, 1, 0
      %vm432 = vcmp.eq.s32.totalorder %v428, 1
      %vm433 = vcmp.eq.s32.totalorder %v429, 1
      %vm434 = vcmp.eq.s32.totalorder %v430, 1
      %vm435 = vcmp.eq.s32.totalorder %v431, 1
      %v436 = vsel %vm432, %v427, 0.0
      %v437 = vsel %vm433, %v420, 0.0
      %v438 = vsel %vm434, %v421, 0.0
      %v439 = vsel %vm435, %v422, 0.0
      %440 = vrot.lane.b32.xlu0 %v345, 1
      %v441 = vpop.permute.xlu0 %440
      %443 = vrot.lane.b32.xlu0 %v342, 1
      %v444 = vpop.permute.xlu0 %443
      %445 = vrot.lane.b32.xlu0 %v343, 1
      %v446 = vpop.permute.xlu0 %445
      %447 = vrot.lane.b32.xlu0 %v344, 1
      %v448 = vpop.permute.xlu0 %447
      %vm449 = vcmask 7168
      %v450 = vsel %vm449, %v444, %v446
      %v451 = vsel %vm449, %v446, %v448
      %v452 = vsel %vm449, %v448, %v441
      %v457 = vsel %vm449, %v441, %v444
      %v458 = vsel %vm299, 1, 0
      %v459 = vsel %vm300, 1, 0
      %v460 = vsel %vm301, 1, 0
      %v461 = vsel %vm302, 1, 0
      %vm462 = vcmp.eq.s32.totalorder %v458, 1
      %vm463 = vcmp.eq.s32.totalorder %v459, 1
      %vm464 = vcmp.eq.s32.totalorder %v460, 1
      %vm465 = vcmp.eq.s32.totalorder %v461, 1
      %v466 = vsel %vm462, %v457, 0.0
      %v467 = vsel %vm463, %v450, 0.0
      %v468 = vsel %vm464, %v451, 0.0
      %v469 = vsel %vm465, %v452, 0.0
      %470 = vrot.lane.b32.xlu0 %v342, 127
      %v471 = vpop.permute.xlu0 %470
      %472 = vrot.lane.b32.xlu0 %v343, 127
      %v473 = vpop.permute.xlu0 %472
      %474 = vrot.lane.b32.xlu0 %v344, 127
      %v475 = vpop.permute.xlu0 %474
      %476 = vrot.lane.b32.xlu0 %v345, 127
      %v477 = vpop.permute.xlu0 %476
      %vm478 = vcmask 1039360
      %v479 = vsel %vm478, %v471, %v473
      %v480 = vsel %vm478, %v473, %v475
      %v481 = vsel %vm478, %v475, %v477
      %v487 = vsel %vm478, %v477, %v471
      %v488 = vsel %vm303, 1, 0
      %v489 = vsel %vm304, 1, 0
      %v490 = vsel %vm305, 1, 0
      %v491 = vsel %vm306, 1, 0
      %vm492 = vcmp.eq.s32.totalorder %v488, 1
      %vm493 = vcmp.eq.s32.totalorder %v489, 1
      %vm494 = vcmp.eq.s32.totalorder %v490, 1
      %vm495 = vcmp.eq.s32.totalorder %v491, 1
      %v496 = vsel %vm492, %v479, 0.0
      %v497 = vsel %vm493, %v480, 0.0
      %v498 = vsel %vm494, %v481, 0.0
      %v499 = vsel %vm495, %v487, 0.0
      %500 = vrot.lane.b32.xlu0 %v342, 113
      %v501 = vpop.permute.xlu0 %500
      %502 = vrot.lane.b32.xlu0 %v343, 113
      %v503 = vpop.permute.xlu0 %502
      %504 = vrot.lane.b32.xlu0 %v344, 113
      %v505 = vpop.permute.xlu0 %504
      %506 = vrot.lane.b32.xlu0 %v345, 113
      %v507 = vpop.permute.xlu0 %506
      %vm508 = vcmask 924672
      %v509 = vsel %vm508, %v501, %v503
      %v510 = vsel %vm508, %v503, %v505
      %v511 = vsel %vm508, %v505, %v507
      %v517 = vsel %vm508, %v507, %v501
      %v518 = vsel %vm323, 1, 0
      %v519 = vsel %vm324, 1, 0
      %v520 = vsel %vm325, 1, 0
      %v521 = vsel %vm326, 1, 0
      %vm522 = vcmp.eq.s32.totalorder %v518, 1
      %vm523 = vcmp.eq.s32.totalorder %v519, 1
      %vm524 = vcmp.eq.s32.totalorder %v520, 1
      %vm525 = vcmp.eq.s32.totalorder %v521, 1
      %v526 = vsel %vm522, %v509, 0.0
      %v527 = vsel %vm523, %v510, 0.0
      %v528 = vsel %vm524, %v511, 0.0
      %v529 = vsel %vm525, %v517, 0.0
      %530 = vrot.lane.b32.xlu0 %v342, 112
      %v531 = vpop.permute.xlu0 %530
      %532 = vrot.lane.b32.xlu0 %v343, 112
      %v533 = vpop.permute.xlu0 %532
      %534 = vrot.lane.b32.xlu0 %v344, 112
      %v535 = vpop.permute.xlu0 %534
      %536 = vrot.lane.b32.xlu0 %v345, 112
      %v537 = vpop.permute.xlu0 %536
      %vm538 = vcmask 916480
      %v539 = vsel %vm538, %v531, %v533
      %v540 = vsel %vm538, %v533, %v535
      %v541 = vsel %vm538, %v535, %v537
      %v547 = vsel %vm538, %v537, %v531
      %v548 = vsel %vm311, 1, 0
      %v549 = vsel %vm312, 1, 0
      %v550 = vsel %vm313, 1, 0
      %v551 = vsel %vm314, 1, 0
      %vm552 = vcmp.eq.s32.totalorder %v548, 1
      %vm553 = vcmp.eq.s32.totalorder %v549, 1
      %vm554 = vcmp.eq.s32.totalorder %v550, 1
      %vm555 = vcmp.eq.s32.totalorder %v551, 1
      %v556 = vsel %vm552, %v539, 0.0
      %v557 = vsel %vm553, %v540, 0.0
      %v558 = vsel %vm554, %v541, 0.0
      %v559 = vsel %vm555, %v547, 0.0
      %560 = vrot.lane.b32.xlu0 %v342, 111
      %v561 = vpop.permute.xlu0 %560
      %562 = vrot.lane.b32.xlu0 %v343, 111
      %v563 = vpop.permute.xlu0 %562
      %564 = vrot.lane.b32.xlu0 %v344, 111
      %v565 = vpop.permute.xlu0 %564
      %566 = vrot.lane.b32.xlu0 %v345, 111
      %v567 = vpop.permute.xlu0 %566
      %vm568 = vcmask 908288
      %v569 = vsel %vm568, %v561, %v563
      %v570 = vsel %vm568, %v563, %v565
      %v571 = vsel %vm568, %v565, %v567
      %v577 = vsel %vm568, %v567, %v561
      %v578 = vsel %vm327, 1, 0
      %v579 = vsel %vm328, 1, 0
      %v580 = vsel %vm329, 1, 0
      %v581 = vsel %vm330, 1, 0
      %vm582 = vcmp.eq.s32.totalorder %v578, 1
      %vm583 = vcmp.eq.s32.totalorder %v579, 1
      %vm584 = vcmp.eq.s32.totalorder %v580, 1
      %vm585 = vcmp.eq.s32.totalorder %v581, 1
      %v586 = vsel %vm582, %v569, 0.0
      %v587 = vsel %vm583, %v570, 0.0
      %v588 = vsel %vm584, %v571, 0.0
      %v589 = vsel %vm585, %v577, 0.0
      %v590 = vld [vmem:[%s1] sm:$0xf]
      %v591 = vpack.c.bf16 %v406, %v376
      %v592 = vpack.c.bf16 %v407, %v377
      %v593 = vpack.c.bf16 %v408, %v378
      %v594 = vpack.c.bf16 %v409, %v379
      %v595 = vpack.c.bf16 %v466, %v436
      %v596 = vpack.c.bf16 %v467, %v437
      %v597 = vpack.c.bf16 %v468, %v438
      %v598 = vpack.c.bf16 %v469, %v439
      %v599 = vpack.c.bf16 %v496, %v342
      %v600 = vpack.c.bf16 %v497, %v343
      %v601 = vpack.c.bf16 %v498, %v344
      %v602 = vpack.c.bf16 %v499, %v345
      %v603 = vpack.c.bf16 %v556, %v526
      %v604 = vpack.c.bf16 %v557, %v527
      %v605 = vpack.c.bf16 %v558, %v528
      %v606 = vpack.c.bf16 %v559, %v529
      %v607 = vpack.c.bf16 %v586, %v586
      %v608 = vpack.c.bf16 %v587, %v587
      %v609 = vpack.c.bf16 %v588, %v588
      %v610 = vpack.c.bf16 %v589, %v589
      %v611 = vld [vmem:[%s2] sm:$0xff]
      %613 = vset.pattern.permute.xlu0 0
      %614 = vperm.xlu0 %613, %v611
      %v615 = vpop.permute.xlu0 %614
      %vm617 = vcmask 588800
      %v619 = vsel %vm617, %v590, 0
      %vm621 = vcmask 1043456
      %v623 = vsel %vm621, %v607, 0
      %v626 = vsel %vm621, %v608, 0
      %v629 = vsel %vm621, %v609, 0
      %v632 = vsel %vm621, %v610, 0
      %634 = vmatprep.subr.bf16.mxu0 %v592
      %635 = vmatpush1.bf16.msra.mxu0 %v591
      %636 = vmatprep.subr.bf16.mxu0 %v596
      %637 = vmatpush1.bf16.msra.mxu0 %v595
      %638 = vmatprep.subr.bf16.mxu0 %v600
      %639 = vmatpush1.bf16.msra.mxu0 %v599
      %640 = vmatprep.subr.bf16.mxu0 %v604
      %641 = vmatpush1.bf16.msra.mxu0 %v603
      %642 = vmatprep.subr.bf16.mxu0 %v626
      %643 = vmatpush1.bf16.msra.mxu0 %v623
      %644 = vmatprep.subr.bf16.mxu0 0
      %645 = vmatpush1.bf16.msra.mxu0 0
      %646 = vmatprep.subr.bf16.mxu0 0
      %647 = vmatpush1.bf16.msra.mxu0 0
      %648 = vmatprep.subr.bf16.mxu0 0
      %649 = vmatpush1.bf16.msra.mxu0 0
      %650 = vmatprep.subr.bf16.mxu0 0
      %651 = vmatpush1.bf16.msra.mxu0 0
      %652 = vmatprep.subr.bf16.mxu0 0
      %653 = vmatpush1.bf16.msra.mxu0 0
      %654 = vmatprep.subr.bf16.mxu0 0
      %655 = vmatpush1.bf16.msra.mxu0 0
      %656 = vmatprep.subr.bf16.mxu0 0
      %657 = vmatpush1.bf16.msra.mxu0 0
      %658 = vmatprep.subr.bf16.mxu0 0
      %659 = vmatpush1.bf16.msra.mxu0 0
      %660 = vmatprep.subr.bf16.mxu0 0
      %661 = vmatpush1.bf16.msra.mxu0 0
      %662 = vmatprep.subr.bf16.mxu0 0
      %663 = vmatpush1.bf16.msra.mxu0 0
      %664 = vmatprep.subr.bf16.mxu0 0
      %665 = vmatpush1.bf16.msra.mxu0 0
      %666 = vmatprep.mubr.bf16.mxu0 0
      %667 = vmatmul.mubr.bf16.gmra.mrb[0].mxu0 %v619
      %v668 = vpop.f32.mrb[0].mxu0
      %v669 = vadd.f32 %v615, %v668
      %v670 = vpop.f32.mrb[0].mxu0
      %v671 = vadd.f32 %v615, %v670
      %v672 = vpop.f32.mrb[0].mxu0
      %v673 = vpop.f32.mrb[0].mxu0
      %674 = vdwg.mxu0
      %675 = vmatprep.subr.bf16.mxu0 %v594
      %676 = vmatpush1.bf16.msra.mxu0 %v593
      %677 = vmatprep.subr.bf16.mxu0 %v598
      %678 = vmatpush1.bf16.msra.mxu0 %v597
      %679 = vmatprep.subr.bf16.mxu0 %v602
      %680 = vmatpush1.bf16.msra.mxu0 %v601
      %681 = vmatprep.subr.bf16.mxu0 %v606
      %682 = vmatpush1.bf16.msra.mxu0 %v605
      %683 = vmatprep.subr.bf16.mxu0 %v632
      %684 = vmatpush1.bf16.msra.mxu0 %v629
      %685 = vmatprep.subr.bf16.mxu0 0
      %686 = vmatpush1.bf16.msra.mxu0 0
      %687 = vmatprep.subr.bf16.mxu0 0
      %688 = vmatpush1.bf16.msra.mxu0 0
      %689 = vmatprep.subr.bf16.mxu0 0
      %690 = vmatpush1.bf16.msra.mxu0 0
      %691 = vmatprep.subr.bf16.mxu0 0
      %692 = vmatpush1.bf16.msra.mxu0 0
      %693 = vmatprep.subr.bf16.mxu0 0
      %694 = vmatpush1.bf16.msra.mxu0 0
      %695 = vmatprep.subr.bf16.mxu0 0
      %696 = vmatpush1.bf16.msra.mxu0 0
      %697 = vmatprep.subr.bf16.mxu0 0
      %698 = vmatpush1.bf16.msra.mxu0 0
      %699 = vmatprep.subr.bf16.mxu0 0
      %700 = vmatpush1.bf16.msra.mxu0 0
      %701 = vmatprep.subr.bf16.mxu0 0
      %702 = vmatpush1.bf16.msra.mxu0 0
      %703 = vmatprep.subr.bf16.mxu0 0
      %704 = vmatpush1.bf16.msra.mxu0 0
      %705 = vmatprep.subr.bf16.mxu0 0
      %706 = vmatpush1.bf16.msra.mxu0 0
      %707 = vmatprep.mubr.bf16.mxu0 0
      %708 = vmatmul.mubr.bf16.gmra.mrb[0].mxu0 %v619
      %v709 = vpop.f32.mrb[0].mxu0
      %v710 = vadd.f32 %v615, %v709
      %v711 = vpop.f32.mrb[0].mxu0
      %v712 = vadd.f32 %v615, %v711
      %v713 = vpop.f32.mrb[0].mxu0
      %v714 = vpop.f32.mrb[0].mxu0
      %715 = vdwg.mxu0
      %v716 = vmax.f32 %v669, 0.0
      %v717 = vmax.f32 %v671, 0.0
      %v718 = vmax.f32 %v710, 0.0
      %v719 = vmax.f32 %v712, 0.0
      %724 = vrot.lane.b32.xlu0 %v716, 127
      %v725 = vpop.permute.xlu0 %724
      %726 = vrot.lane.b32.xlu0 %v717, 127
      %v727 = vpop.permute.xlu0 %726
      %728 = vrot.lane.b32.xlu0 %v718, 127
      %v729 = vpop.permute.xlu0 %728
      %730 = vrot.lane.b32.xlu0 %v719, 127
      %v731 = vpop.permute.xlu0 %730
      %v732 = vsel %vm478, %v725, %v727
      %v733 = vsel %vm478, %v727, %v729
      %v734 = vsel %vm478, %v729, %v731
      %v740 = vsel %vm478, %v731, %v725
      %v741 = vsel %vm492, %v732, 0.0
      %v742 = vsel %vm493, %v733, 0.0
      %v743 = vsel %vm494, %v734, 0.0
      %v744 = vsel %vm495, %v740, 0.0
      %v745 = vmax.f32 %v716, %v741
      %v746 = vmax.f32 %v717, %v742
      %v747 = vmax.f32 %v718, %v743
      %v748 = vmax.f32 %v719, %v744
      %753 = vrot.lane.b32.xlu0 %v745, 112
      %v754 = vpop.permute.xlu0 %753
      %755 = vrot.lane.b32.xlu0 %v746, 112
      %v756 = vpop.permute.xlu0 %755
      %757 = vrot.lane.b32.xlu0 %v747, 112
      %v758 = vpop.permute.xlu0 %757
      %759 = vrot.lane.b32.xlu0 %v748, 112
      %v760 = vpop.permute.xlu0 %759
      %v761 = vsel %vm538, %v754, %v756
      %v762 = vsel %vm538, %v756, %v758
      %v763 = vsel %vm538, %v758, %v760
      %v769 = vsel %vm538, %v760, %v754
      %v770 = vsel %vm552, %v761, 0.0
      %v771 = vsel %vm553, %v762, 0.0
      %v772 = vsel %vm554, %v763, 0.0
      %v773 = vsel %vm555, %v769, 0.0
      %v774 = vmax.f32 %v745, %v770
      %v775 = vmax.f32 %v746, %v771
      %v776 = vmax.f32 %v747, %v772
      %v777 = vmax.f32 %v748, %v773
      %v778 = vpack.c.bf16 %v774, %v774
      %v779 = vpack.c.bf16 %v775, %v775
      %v780 = vpack.c.bf16 %v776, %v776
      %v781 = vpack.c.bf16 %v777, %v777
      %v782 = vld [vmem:[%s5] sm:$0xf]
      %v783 = vld [vmem:[%s5 + $0x4] sm:$0xf]
      %v784 = vld [vmem:[%s5 + $0x8] sm:$0xf]
      %v785 = vld [vmem:[%s5 + $0xc] sm:$0xf]
      %v786 = vld [vmem:[%s5 + $0x10] sm:$0xf]
      %v787 = vld [vmem:[%s5 + $0x14] sm:$0xf]
      %v788 = vld [vmem:[%s5 + $0x18] sm:$0xf]
      %v789 = vld [vmem:[%s5 + $0x1c] sm:$0xf]
      %v790 = vld [vmem:[%s5 + $0x20] sm:$0xf]
      %v791 = vld [vmem:[%s5 + $0x24] sm:$0xf]
      %v792 = vld [vmem:[%s5 + $0x28] sm:$0xf]
      %v793 = vld [vmem:[%s5 + $0x2c] sm:$0xf]
      %v794 = vld [vmem:[%s5 + $0x30] sm:$0xf]
      %v795 = vld [vmem:[%s5 + $0x34] sm:$0xf]
      %v796 = vld [vmem:[%s5 + $0x38] sm:$0xf]
      %v797 = vld [vmem:[%s5 + $0x3c] sm:$0xf]
      %v798 = vld [vmem:[%s5 + $0x40] sm:$0xf]
      %v799 = vld [vmem:[%s5 + $0x44] sm:$0xf]
      %v800 = vld [vmem:[%s5 + $0x48] sm:$0xf]
      %v801 = vld [vmem:[%s5 + $0x4c] sm:$0xf]
      %v802 = vld [vmem:[%s5 + $0x50] sm:$0xf]
      %v803 = vld [vmem:[%s5 + $0x54] sm:$0xf]
      %v804 = vld [vmem:[%s5 + $0x58] sm:$0xf]
      %v805 = vld [vmem:[%s5 + $0x5c] sm:$0xf]
      %v806 = vld [vmem:[%s5 + $0x60] sm:$0xf]
      %v807 = vld [vmem:[%s5 + $0x64] sm:$0xf]
      %v808 = vld [vmem:[%s5 + $0x68] sm:$0xf]
      %v809 = vld [vmem:[%s5 + $0x6c] sm:$0xf]
      %v810 = vld [vmem:[%s5 + $0x70] sm:$0xf]
      %v811 = vld [vmem:[%s5 + $0x74] sm:$0xf]
      %v812 = vld [vmem:[%s5 + $0x78] sm:$0xf]
      %v813 = vld [vmem:[%s5 + $0x7c] sm:$0xf]
      %v814 = vld [vmem:[%s5 + $0x80] sm:$0xf]
      %v815 = vld [vmem:[%s5 + $0x84] sm:$0xf]
      %v816 = vld [vmem:[%s5 + $0x88] sm:$0xf]
      %v817 = vld [vmem:[%s5 + $0x8c] sm:$0xf]
      %v818 = vld [vmem:[%s5 + $0x90] sm:$0xf]
      %v819 = vld [vmem:[%s5 + $0x94] sm:$0xf]
      %v820 = vld [vmem:[%s5 + $0x98] sm:$0xf]
      %v821 = vld [vmem:[%s5 + $0x9c] sm:$0xf]
      %v822 = vld [vmem:[%s5 + $0xa0] sm:$0xf]
      %v823 = vld [vmem:[%s5 + $0xa4] sm:$0xf]
      %v824 = vld [vmem:[%s5 + $0xa8] sm:$0xf]
      %v825 = vld [vmem:[%s5 + $0xac] sm:$0xf]
      %v826 = vld [vmem:[%s5 + $0xb0] sm:$0xf]
      %v827 = vld [vmem:[%s5 + $0xb4] sm:$0xf]
      %v828 = vld [vmem:[%s5 + $0xb8] sm:$0xf]
      %v829 = vld [vmem:[%s5 + $0xbc] sm:$0xf]
      %v830 = vld [vmem:[%s5 + $0xc0] sm:$0xf]
      %v831 = vld [vmem:[%s5 + $0xc4] sm:$0xf]
      %v832 = vld [vmem:[%s5 + $0xc8] sm:$0xf]
      %v833 = vld [vmem:[%s5 + $0xcc] sm:$0xf]
      %v834 = vld [vmem:[%s5 + $0xd0] sm:$0xf]
      %v835 = vld [vmem:[%s5 + $0xd4] sm:$0xf]
      %v836 = vld [vmem:[%s5 + $0xd8] sm:$0xf]
      %v837 = vld [vmem:[%s5 + $0xdc] sm:$0xf]
      %v838 = vld [vmem:[%s5 + $0xe0] sm:$0xf]
      %v839 = vld [vmem:[%s5 + $0xe4] sm:$0xf]
      %v840 = vld [vmem:[%s5 + $0xe8] sm:$0xf]
      %v841 = vld [vmem:[%s5 + $0xec] sm:$0xf]
      %v842 = vld [vmem:[%s5 + $0xf0] sm:$0xf]
      %v843 = vld [vmem:[%s5 + $0xf4] sm:$0xf]
      %v844 = vld [vmem:[%s5 + $0xf8] sm:$0xf]
      %v845 = vld [vmem:[%s5 + $0xfc] sm:$0xf]
      %v910 = vunpack.c.l.b16 %v782
      %v911 = vunpack.c.l.b16 %v783
      %v912 = vunpack.c.l.b16 %v784
      %v913 = vunpack.c.l.b16 %v785
      %v914 = vunpack.c.l.b16 %v786
      %v915 = vunpack.c.l.b16 %v787
      %v916 = vunpack.c.l.b16 %v788
      %v917 = vunpack.c.l.b16 %v789
      %v918 = vunpack.c.l.b16 %v790
      %v919 = vunpack.c.l.b16 %v791
      %v920 = vunpack.c.l.b16 %v792
      %v921 = vunpack.c.l.b16 %v793
      %v922 = vunpack.c.l.b16 %v794
      %v923 = vunpack.c.l.b16 %v795
      %v924 = vunpack.c.l.b16 %v796
      %v925 = vunpack.c.l.b16 %v797
      %v926 = vunpack.c.l.b16 %v798
      %v927 = vunpack.c.l.b16 %v799
      %v928 = vunpack.c.l.b16 %v800
      %v929 = vunpack.c.l.b16 %v801
      %v930 = vunpack.c.l.b16 %v802
      %v931 = vunpack.c.l.b16 %v803
      %v932 = vunpack.c.l.b16 %v804
      %v933 = vunpack.c.l.b16 %v805
      %v934 = vunpack.c.l.b16 %v806
      %v935 = vunpack.c.l.b16 %v807
      %v936 = vunpack.c.l.b16 %v808
      %v937 = vunpack.c.l.b16 %v809
      %v938 = vunpack.c.l.b16 %v810
      %v939 = vunpack.c.l.b16 %v811
      %v940 = vunpack.c.l.b16 %v812
      %v941 = vunpack.c.l.b16 %v813
      %v942 = vunpack.c.l.b16 %v814
      %v943 = vunpack.c.l.b16 %v815
      %v944 = vunpack.c.l.b16 %v816
      %v945 = vunpack.c.l.b16 %v817
      %v946 = vunpack.c.l.b16 %v818
      %v947 = vunpack.c.l.b16 %v819
      %v948 = vunpack.c.l.b16 %v820
      %v949 = vunpack.c.l.b16 %v821
      %v950 = vunpack.c.l.b16 %v822
      %v951 = vunpack.c.l.b16 %v823
      %v952 = vunpack.c.l.b16 %v824
      %v953 = vunpack.c.l.b16 %v825
      %v954 = vunpack.c.l.b16 %v826
      %v955 = vunpack.c.l.b16 %v827
      %v956 = vunpack.c.l.b16 %v828
      %v957 = vunpack.c.l.b16 %v829
      %v958 = vunpack.c.l.b16 %v830
      %v959 = vunpack.c.l.b16 %v831
      %v960 = vunpack.c.l.b16 %v832
      %v961 = vunpack.c.l.b16 %v833
      %v962 = vunpack.c.l.b16 %v834
      %v963 = vunpack.c.l.b16 %v835
      %v964 = vunpack.c.l.b16 %v836
      %v965 = vunpack.c.l.b16 %v837
      %v966 = vunpack.c.l.b16 %v838
      %v967 = vunpack.c.l.b16 %v839
      %v968 = vunpack.c.l.b16 %v840
      %v969 = vunpack.c.l.b16 %v841
      %v970 = vunpack.c.l.b16 %v842
      %v971 = vunpack.c.l.b16 %v843
      %v972 = vunpack.c.l.b16 %v844
      %v973 = vunpack.c.l.b16 %v845
      %v974 = vpack.c.b16 %v911, %v910
      %v975 = vpack.c.b16 %v913, %v912
      %v976 = vpack.c.b16 %v915, %v914
      %v977 = vpack.c.b16 %v917, %v916
      %v978 = vpack.c.b16 %v919, %v918
      %v979 = vpack.c.b16 %v921, %v920
      %v980 = vpack.c.b16 %v923, %v922
      %v981 = vpack.c.b16 %v925, %v924
      %v982 = vpack.c.b16 %v927, %v926
      %v983 = vpack.c.b16 %v929, %v928
      %v984 = vpack.c.b16 %v931, %v930
      %v985 = vpack.c.b16 %v933, %v932
      %v986 = vpack.c.b16 %v935, %v934
      %v987 = vpack.c.b16 %v937, %v936
      %v988 = vpack.c.b16 %v939, %v938
      %v989 = vpack.c.b16 %v941, %v940
      %v990 = vpack.c.b16 %v943, %v942
      %v991 = vpack.c.b16 %v945, %v944
      %v992 = vpack.c.b16 %v947, %v946
      %v993 = vpack.c.b16 %v949, %v948
      %v994 = vpack.c.b16 %v951, %v950
      %v995 = vpack.c.b16 %v953, %v952
      %v996 = vpack.c.b16 %v955, %v954
      %v997 = vpack.c.b16 %v957, %v956
      %v998 = vpack.c.b16 %v959, %v958
      %v999 = vpack.c.b16 %v961, %v960
      %v1000 = vpack.c.b16 %v963, %v962
      %v1001 = vpack.c.b16 %v965, %v964
      %v1002 = vpack.c.b16 %v967, %v966
      %v1003 = vpack.c.b16 %v969, %v968
      %v1004 = vpack.c.b16 %v971, %v970
      %v1005 = vpack.c.b16 %v973, %v972
      %1038 = vmatprep.subr.bf16.mxu0 0
      %1039 = vmatpush1.bf16.msra.mxu0 %v974
      %1040 = vmatprep.subr.bf16.mxu0 0
      %1041 = vmatpush1.bf16.msra.mxu0 %v975
      %1042 = vmatprep.subr.bf16.mxu0 0
      %1043 = vmatpush1.bf16.msra.mxu0 %v976
      %1044 = vmatprep.subr.bf16.mxu0 0
      %1045 = vmatpush1.bf16.msra.mxu0 %v977
      %1046 = vmatprep.subr.bf16.mxu0 0
      %1047 = vmatpush1.bf16.msra.mxu0 %v978
      %1048 = vmatprep.subr.bf16.mxu0 0
      %1049 = vmatpush1.bf16.msra.mxu0 %v979
      %1050 = vmatprep.subr.bf16.mxu0 0
      %1051 = vmatpush1.bf16.msra.mxu0 %v980
      %1052 = vmatprep.subr.bf16.mxu0 0
      %1053 = vmatpush1.bf16.msra.mxu0 %v981
      %1054 = vmatprep.subr.bf16.mxu0 0
      %1055 = vmatpush1.bf16.msra.mxu0 %v982
      %1056 = vmatprep.subr.bf16.mxu0 0
      %1057 = vmatpush1.bf16.msra.mxu0 %v983
      %1058 = vmatprep.subr.bf16.mxu0 0
      %1059 = vmatpush1.bf16.msra.mxu0 %v984
      %1060 = vmatprep.subr.bf16.mxu0 0
      %1061 = vmatpush1.bf16.msra.mxu0 %v985
      %1062 = vmatprep.subr.bf16.mxu0 0
      %1063 = vmatpush1.bf16.msra.mxu0 %v986
      %1064 = vmatprep.subr.bf16.mxu0 0
      %1065 = vmatpush1.bf16.msra.mxu0 %v987
      %1066 = vmatprep.subr.bf16.mxu0 0
      %1067 = vmatpush1.bf16.msra.mxu0 %v988
      %1068 = vmatprep.subr.bf16.mxu0 0
      %1069 = vmatpush1.bf16.msra.mxu0 %v989
      %1070 = vmatprep.mubr.bf16.mxu0 %v779
      %1071 = vmatmul.mubr.bf16.gmra.mrb[0].mxu0 %v778
      %v1072 = vpop.f32.mrb[0].mxu0
      %v1073 = vadd.f32 0.0, %v1072
      %v1074 = vpop.f32.mrb[0].mxu0
      %v1075 = vpop.f32.mrb[0].mxu0
      %v1076 = vpop.f32.mrb[0].mxu0
      %1077 = vdwg.mxu0
      %1078 = vmatprep.subr.bf16.mxu0 0
      %1079 = vmatpush1.bf16.msra.mxu0 %v990
      %1080 = vmatprep.subr.bf16.mxu0 0
      %1081 = vmatpush1.bf16.msra.mxu0 %v991
      %1082 = vmatprep.subr.bf16.mxu0 0
      %1083 = vmatpush1.bf16.msra.mxu0 %v992
      %1084 = vmatprep.subr.bf16.mxu0 0
      %1085 = vmatpush1.bf16.msra.mxu0 %v993
      %1086 = vmatprep.subr.bf16.mxu0 0
      %1087 = vmatpush1.bf16.msra.mxu0 %v994
      %1088 = vmatprep.subr.bf16.mxu0 0
      %1089 = vmatpush1.bf16.msra.mxu0 %v995
      %1090 = vmatprep.subr.bf16.mxu0 0
      %1091 = vmatpush1.bf16.msra.mxu0 %v996
      %1092 = vmatprep.subr.bf16.mxu0 0
      %1093 = vmatpush1.bf16.msra.mxu0 %v997
      %1094 = vmatprep.subr.bf16.mxu0 0
      %1095 = vmatpush1.bf16.msra.mxu0 %v998
      %1096 = vmatprep.subr.bf16.mxu0 0
      %1097 = vmatpush1.bf16.msra.mxu0 %v999
      %1098 = vmatprep.subr.bf16.mxu0 0
      %1099 = vmatpush1.bf16.msra.mxu0 %v1000
      %1100 = vmatprep.subr.bf16.mxu0 0
      %1101 = vmatpush1.bf16.msra.mxu0 %v1001
      %1102 = vmatprep.subr.bf16.mxu0 0
      %1103 = vmatpush1.bf16.msra.mxu0 %v1002
      %1104 = vmatprep.subr.bf16.mxu0 0
      %1105 = vmatpush1.bf16.msra.mxu0 %v1003
      %1106 = vmatprep.subr.bf16.mxu0 0
      %1107 = vmatpush1.bf16.msra.mxu0 %v1004
      %1108 = vmatprep.subr.bf16.mxu0 0
      %1109 = vmatpush1.bf16.msra.mxu0 %v1005
      %1110 = vmatprep.mubr.bf16.mxu0 %v781
      %1111 = vmatmul.mubr.bf16.gmra.mrb[0].mxu0 %v780
      %v1112 = vpop.f32.mrb[0].mxu0
      %v1113 = vadd.f32 %v1073, %v1112
      %v1114 = vpop.f32.mrb[0].mxu0
      %v1115 = vpop.f32.mrb[0].mxu0
      %v1116 = vpop.f32.mrb[0].mxu0
      %1117 = vdwg.mxu0
      %1119 = vrot.lane.b32.xlu0 %v1113, 9
      %v1120 = vpop.permute.xlu0 %1119
      %v1122 = vsel %vm338, 1, 0
      %vm1123 = vcmp.eq.s32.totalorder %v1122, 1
      %v1124 = vsel %vm1123, %v1120, 0.0
      %1125 = vrot.lane.b32.xlu0 %v1113, 8
      %v1126 = vpop.permute.xlu0 %1125
      %v1128 = vsel %vm336, 1, 0
      %vm1129 = vcmp.eq.s32.totalorder %v1128, 1
      %v1130 = vsel %vm1129, %v1126, 0.0
      %1131 = vrot.lane.b32.xlu0 %v1113, 7
      %v1132 = vpop.permute.xlu0 %1131
      %v1134 = vsel %vm339, 1, 0
      %vm1135 = vcmp.eq.s32.totalorder %v1134, 1
      %v1136 = vsel %vm1135, %v1132, 0.0
      %1137 = vrot.lane.b32.xlu0 %v1113, 1
      %v1138 = vpop.permute.xlu0 %1137
      %v1140 = vsel %vm334, 1, 0
      %vm1141 = vcmp.eq.s32.totalorder %v1140, 1
      %v1142 = vsel %vm1141, %v1138, 0.0
      %1143 = vrot.lane.b32.xlu0 %v1113, 127
      %v1144 = vpop.permute.xlu0 %1143
      %v1146 = vsel %vm335, 1, 0
      %vm1147 = vcmp.eq.s32.totalorder %v1146, 1
      %v1148 = vsel %vm1147, %v1144, 0.0
      %1149 = vrot.lane.b32.xlu0 %v1113, 121
      %v1150 = vpop.permute.xlu0 %1149
      %v1152 = vsel %vm340, 1, 0
      %vm1153 = vcmp.eq.s32.totalorder %v1152, 1
      %v1154 = vsel %vm1153, %v1150, 0.0
      %1155 = vrot.lane.b32.xlu0 %v1113, 120
      %v1156 = vpop.permute.xlu0 %1155
      %v1158 = vsel %vm337, 1, 0
      %vm1159 = vcmp.eq.s32.totalorder %v1158, 1
      %v1160 = vsel %vm1159, %v1156, 0.0
      %1161 = vrot.lane.b32.xlu0 %v1113, 119
      %v1162 = vpop.permute.xlu0 %1161
      %v1164 = vsel %vm341, 1, 0
      %vm1165 = vcmp.eq.s32.totalorder %v1164, 1
      %v1166 = vsel %vm1165, %v1162, 0.0
      %v1167 = vld [vmem:[%s3] sm:$0xf]
      %v1168 = vld [vmem:[%s3 + $0x4] sm:$0xf]
      %v1169 = vpack.c.bf16 %v1130, %v1124
      %v1170 = vpack.c.bf16 %v1142, %v1136
      %v1171 = vpack.c.bf16 %v1148, %v1113
      %v1172 = vpack.c.bf16 %v1160, %v1154
      %v1173 = vpack.c.bf16 %v1166, %v1166
      %v1174 = vld [vmem:[%s4] sm:$0xff]
      %v1175 = vld [vmem:[%s4 + $0x8] sm:$0xff]
      %1177 = vset.pattern.permute.xlu0 0
      %1178 = vperm.xlu0 %1177, %v1174
      %v1179 = vpop.permute.xlu0 %1178
      %1182 = vset.pattern.permute.xlu0 0
      %1183 = vperm.xlu0 %1182, %v1175
      %v1184 = vpop.permute.xlu0 %1183
      %v1188 = vunpack.c.l.b16 %v1167
      %v1189 = vunpack.c.l.b16 %v1168
      %v1190 = vpack.c.b16 %v1189, %v1188
      %v1192 = vsel %vm617, %v1190, 0
      %v1195 = vsel %vm621, %v1173, 0
      %1197 = vmatprep.subr.bf16.mxu0 0
      %1198 = vmatpush1.bf16.msra.mxu0 %v1169
      %1199 = vmatprep.subr.bf16.mxu0 0
      %1200 = vmatpush1.bf16.msra.mxu0 %v1170
      %1201 = vmatprep.subr.bf16.mxu0 0
      %1202 = vmatpush1.bf16.msra.mxu0 %v1171
      %1203 = vmatprep.subr.bf16.mxu0 0
      %1204 = vmatpush1.bf16.msra.mxu0 %v1172
      %1205 = vmatprep.subr.bf16.mxu0 0
      %1206 = vmatpush1.bf16.msra.mxu0 %v1195
      %1207 = vmatprep.subr.bf16.mxu0 0
      %1208 = vmatpush1.bf16.msra.mxu0 0
      %1209 = vmatprep.subr.bf16.mxu0 0
      %1210 = vmatpush1.bf16.msra.mxu0 0
      %1211 = vmatprep.subr.bf16.mxu0 0
      %1212 = vmatpush1.bf16.msra.mxu0 0
      %1213 = vmatprep.subr.bf16.mxu0 0
      %1214 = vmatpush1.bf16.msra.mxu0 0
      %1215 = vmatprep.subr.bf16.mxu0 0
      %1216 = vmatpush1.bf16.msra.mxu0 0
      %1217 = vmatprep.subr.bf16.mxu0 0
      %1218 = vmatpush1.bf16.msra.mxu0 0
      %1219 = vmatprep.subr.bf16.mxu0 0
      %1220 = vmatpush1.bf16.msra.mxu0 0
      %1221 = vmatprep.subr.bf16.mxu0 0
      %1222 = vmatpush1.bf16.msra.mxu0 0
      %1223 = vmatprep.subr.bf16.mxu0 0
      %1224 = vmatpush1.bf16.msra.mxu0 0
      %1225 = vmatprep.subr.bf16.mxu0 0
      %1226 = vmatpush1.bf16.msra.mxu0 0
      %1227 = vmatprep.subr.bf16.mxu0 0
      %1228 = vmatpush1.bf16.msra.mxu0 0
      %1229 = vmatprep.mubr.bf16.mxu0 0
      %1230 = vmatmul.mubr.bf16.gmra.mrb[0].mxu0 %v1192
      %v1231 = vpop.f32.mrb[0].mxu0
      %v1232 = vadd.f32 %v1179, %v1231
      %v1233 = vpop.f32.mrb[0].mxu0
      %v1234 = vpop.f32.mrb[0].mxu0
      %v1235 = vadd.f32 %v1184, %v1234
      %v1236 = vpop.f32.mrb[0].mxu0
      %1237 = vdwg.mxu0
      %v1238 = vmax.f32 %v1232, 0.0
      %v1239 = vmax.f32 %v1235, 0.0
      %v1240 = vpack.c.bf16 %v1239, %v1238
      %v1241 = vld [vmem:[%s6] sm:$0xf]
      %v1242 = vld [vmem:[%s6 + $0x4] sm:$0xf]
      %v1243 = vld [vmem:[%s6 + $0x8] sm:$0xf]
      %v1244 = vld [vmem:[%s6 + $0xc] sm:$0xf]
      %v1245 = vld [vmem:[%s6 + $0x10] sm:$0xf]
      %v1246 = vld [vmem:[%s6 + $0x14] sm:$0xf]
      %v1247 = vld [vmem:[%s6 + $0x18] sm:$0xf]
      %v1248 = vld [vmem:[%s6 + $0x1c] sm:$0xf]
      %v1249 = vld [vmem:[%s6 + $0x20] sm:$0xf]
      %v1250 = vld [vmem:[%s6 + $0x24] sm:$0xf]
      %v1251 = vld [vmem:[%s6 + $0x28] sm:$0xf]
      %v1252 = vld [vmem:[%s6 + $0x2c] sm:$0xf]
      %v1253 = vld [vmem:[%s6 + $0x30] sm:$0xf]
      %v1254 = vld [vmem:[%s6 + $0x34] sm:$0xf]
      %v1255 = vld [vmem:[%s6 + $0x38] sm:$0xf]
      %v1256 = vld [vmem:[%s6 + $0x3c] sm:$0xf]
      %v1273 = vunpack.c.l.b16 %v1241
      %v1274 = vunpack.c.l.b16 %v1242
      %v1275 = vunpack.c.l.b16 %v1243
      %v1276 = vunpack.c.l.b16 %v1244
      %v1277 = vunpack.c.l.b16 %v1245
      %v1278 = vunpack.c.l.b16 %v1246
      %v1279 = vunpack.c.l.b16 %v1247
      %v1280 = vunpack.c.l.b16 %v1248
      %v1281 = vunpack.c.l.b16 %v1249
      %v1282 = vunpack.c.l.b16 %v1250
      %v1283 = vunpack.c.l.b16 %v1251
      %v1284 = vunpack.c.l.b16 %v1252
      %v1285 = vunpack.c.l.b16 %v1253
      %v1286 = vunpack.c.l.b16 %v1254
      %v1287 = vunpack.c.l.b16 %v1255
      %v1288 = vunpack.c.l.b16 %v1256
      %v1289 = vpack.c.b16 %v1274, %v1273
      %v1290 = vpack.c.b16 %v1276, %v1275
      %v1291 = vpack.c.b16 %v1278, %v1277
      %v1292 = vpack.c.b16 %v1280, %v1279
      %v1293 = vpack.c.b16 %v1282, %v1281
      %v1294 = vpack.c.b16 %v1284, %v1283
      %v1295 = vpack.c.b16 %v1286, %v1285
      %v1296 = vpack.c.b16 %v1288, %v1287
      %1305 = vmatprep.subr.bf16.mxu0 0
      %1306 = vmatpush1.bf16.msra.mxu0 %v1289
      %1307 = vmatprep.subr.bf16.mxu0 0
      %1308 = vmatpush1.bf16.msra.mxu0 %v1290
      %1309 = vmatprep.subr.bf16.mxu0 0
      %1310 = vmatpush1.bf16.msra.mxu0 %v1291
      %1311 = vmatprep.subr.bf16.mxu0 0
      %1312 = vmatpush1.bf16.msra.mxu0 %v1292
      %1313 = vmatprep.subr.bf16.mxu0 0
      %1314 = vmatpush1.bf16.msra.mxu0 %v1293
      %1315 = vmatprep.subr.bf16.mxu0 0
      %1316 = vmatpush1.bf16.msra.mxu0 %v1294
      %1317 = vmatprep.subr.bf16.mxu0 0
      %1318 = vmatpush1.bf16.msra.mxu0 %v1295
      %1319 = vmatprep.subr.bf16.mxu0 0
      %1320 = vmatpush1.bf16.msra.mxu0 %v1296
      %1321 = vmatprep.subr.bf16.mxu0 0
      %1322 = vmatpush1.bf16.msra.mxu0 0
      %1323 = vmatprep.subr.bf16.mxu0 0
      %1324 = vmatpush1.bf16.msra.mxu0 0
      %1325 = vmatprep.subr.bf16.mxu0 0
      %1326 = vmatpush1.bf16.msra.mxu0 0
      %1327 = vmatprep.subr.bf16.mxu0 0
      %1328 = vmatpush1.bf16.msra.mxu0 0
      %1329 = vmatprep.subr.bf16.mxu0 0
      %1330 = vmatpush1.bf16.msra.mxu0 0
      %1331 = vmatprep.subr.bf16.mxu0 0
      %1332 = vmatpush1.bf16.msra.mxu0 0
      %1333 = vmatprep.subr.bf16.mxu0 0
      %1334 = vmatpush1.bf16.msra.mxu0 0
      %1335 = vmatprep.subr.bf16.mxu0 0
      %1336 = vmatpush1.bf16.msra.mxu0 0
      %1337 = vmatprep.mubr.bf16.mxu0 0
      %1338 = vmatmul.mubr.bf16.gmra.mrb[0].mxu0 %v1240
      %v1339 = vpop.f32.mrb[0].mxu0
      %v1340 = vadd.f32 0.0, %v1339
      %v1341 = vpop.f32.mrb[0].mxu0
      %v1342 = vpop.f32.mrb[0].mxu0
      %v1343 = vadd.f32 0.0, %v1342
      %v1344 = vpop.f32.mrb[0].mxu0
      %1345 = vdwg.mxu0
      %vm1346 = vcmask 801792
      %1347 = vst.msk [vmem:[%s280] sm:$0xff] %vm1346, %v1340
      %1348 = vst.msk [vmem:[%s280 + $0x8] sm:$0xff] %vm1346, %v1343
      %p1349 = scmp.lt.s32.totalorder %s18, 1
      %s1350 = scalar_select %p1349, %s18, 1
      %s1351 = smul.addr %s1350, 2
      %s1352 = smul.addr %s1351, 8
      %s1353 = scalar_lea.vmem %s7, %s1352
      // Predicated region
      $region49: #{feature_extractor_forward.1} parent=47 // pred_check
        %p1354 = pneg %p188
      $region50: #{feature_extractor_forward.1} parent=47 // pred_check_branch
        %1356 = sbr.rel (%p1354) target = $region52
      $region51: #{feature_extractor_forward.1} parent=47 // pred_region
        _
      $region52: #{feature_extractor_forward.1} parent=47 // pred_fallthru
        _
    $region48: #{feature_extractor_forward.1} parent=5 // pred_fallthru
      _
    %p1357 = scmp.le.s32.totalorder 2, %s13
    // Predicated region
    $region53: #{feature_extractor_forward.1} parent=5 // pred_check
      %p1358 = pneg %p1357
    $region54: #{feature_extractor_forward.1} parent=5 // pred_check_branch
      %1360 = sbr.rel (%p1358) target = $region56
    $region55: #{feature_extractor_forward.1} parent=5 // pred_region
      %s1361 = ssub.s32 %s13, 2
      // Predicated region
      $region57: #{feature_extractor_forward.1} parent=55 // pred_check
        %p1362 = pneg %p194
      $region58: #{feature_extractor_forward.1} parent=55 // pred_check_branch
        %1364 = sbr.rel (%p1362) target = $region60
      $region59: #{feature_extractor_forward.1} parent=55 // pred_region
        %p1365 = scmp.lt.s32.totalorder %s19, 1
        %s1366 = scalar_select %p1365, %s19, 1
        %s1367 = smul.addr %s1366, 2
        %s1368 = smul.addr %s1367, 8
        %s1369 = scalar_lea.vmem %s7, %s1368
      $region60: #{feature_extractor_forward.1} parent=55 // pred_fallthru
        _
    $region56: #{feature_extractor_forward.1} parent=5 // pred_fallthru
      _
  $region6: #{feature_extractor_forward.1} parent=0 // loop_footer
    %s17 = sadd.s32 1, %s13
  $region7: #{feature_extractor_forward.1} parent=0 // loop_footer_branch
    %12 = sbr.rel target = $region3
  $region8: #{feature_extractor_forward.1} parent=0 // loop_exit
    _

</llo_original>
